<compile_context>
chip_gen: v6e
topology: v6e:2x2x1
jax: 0.10.0
libtpu: 0.0.40
codegen_flags: <defaults>
</compile_context>

<pallas_src>
import functools
import math

import jax
import jax.numpy as jnp
from jax.experimental import pallas as pl
from jax.experimental.pallas import tpu as pltpu

EPS = 1e-6


def _layernorm(t, g, b):
    """MCA Layernorm: unbiased std (ddof=1), eps added to std, then affine (all f32)."""
    h = t.shape[-1]
    mean = jnp.mean(t, axis=-1, keepdims=True)
    var = jnp.sum((t - mean) ** 2, axis=-1, keepdims=True) * (1.0 / (h - 1))
    inv = 1.0 / (jnp.sqrt(var) + EPS)          # exact; LN is not the bottleneck
    return (t - mean) * inv * g + b


def _attention_ffn(y_ref, k, v,
                   wq_ref, bq_ref, wm_ref, bm_ref,
                   g1_ref, be1_ref, w1_ref, bf1_ref, w2_ref, bf2_ref,
                   g2_ref, be2_ref, o_ref):
    """Shared body: Q proj -> softmax(QK^T)V -> merge -> LN1 -> FFN -> LN2."""
    bb, tq, h = y_ref.shape
    mxu = k.dtype                                   # dtype fed to the MXU; accumulation is f32

    # Q projection (1/sqrt(H) already folded into wq/bq by the wrapper).
    y2 = y_ref[...].reshape(bb * tq, h)                                   # f32
    q2 = jnp.dot(y2.astype(mxu), wq_ref[...],
                 preferred_element_type=jnp.float32) + bq_ref[...]
    q3 = q2.reshape(bb, tq, h).astype(mxu)

    # Scaled dot-product attention (single head); softmax in f32, no in-kernel transposes.
    s = jnp.einsum('bqh,bkh->bqk', q3, k, preferred_element_type=jnp.float32)
    s = s - jnp.max(s, axis=-1, keepdims=True)
    p = jnp.exp(s)
    p = p * pl.reciprocal(jnp.sum(p, axis=-1, keepdims=True), approx=True)   # EUP slot
    atted = jnp.einsum('bqk,bkh->bqh', p.astype(mxu), v,
                       preferred_element_type=jnp.float32)
    merged = jnp.dot(atted.reshape(bb * tq, h).astype(mxu), wm_ref[...],
                     preferred_element_type=jnp.float32) + bm_ref[...]

    # Residual + LayerNorm1 (f32).
    y1 = _layernorm(y2 + merged, g1_ref[...], be1_ref[...])

    # FFN: Linear -> ReLU -> Linear (f32 accumulation).
    hmid = jnp.maximum(
        jnp.dot(y1.astype(mxu), w1_ref[...],
                preferred_element_type=jnp.float32) + bf1_ref[...], 0.0)
    ff = jnp.dot(hmid.astype(mxu), w2_ref[...],
                 preferred_element_type=jnp.float32) + bf2_ref[...]

    # Residual + LayerNorm2 (f32).
    out = _layernorm(y1 + ff, g2_ref[...], be2_ref[...])
    o_ref[...] = out.reshape(bb, tq, h).astype(o_ref.dtype)


def ga_kernel_fused(x_ref, y_ref,
                    wv_ref, bv_ref, wk_ref,
                    wq_ref, bq_ref, wm_ref, bm_ref,
                    g1_ref, be1_ref, w1_ref, bf1_ref, w2_ref, bf2_ref,
                    g2_ref, be2_ref,
                    o_ref, k_scr, v_scr):
    """K/V projected in-kernel once per batch block; cached in VMEM scratch across q tiles."""
    qi = pl.program_id(1)
    bb, sx, h = x_ref.shape
    mxu = k_scr.dtype

    @pl.when(qi == 0)
    def _():
        xin = x_ref[...].reshape(bb * sx, h).astype(mxu)
        # bk dropped: q.bk^T is constant along the softmax axis -> softmax unchanged.
        kproj = jnp.dot(xin, wk_ref[...], preferred_element_type=jnp.float32)
        vproj = jnp.dot(xin, wv_ref[...], preferred_element_type=jnp.float32) + bv_ref[...]
        k_scr[...] = kproj.reshape(bb, sx, h).astype(mxu)
        v_scr[...] = vproj.reshape(bb, sx, h).astype(mxu)

    _attention_ffn(y_ref, k_scr[...], v_scr[...],
                   wq_ref, bq_ref, wm_ref, bm_ref,
                   g1_ref, be1_ref, w1_ref, bf1_ref, w2_ref, bf2_ref,
                   g2_ref, be2_ref, o_ref)


def ga_kernel_kv(y_ref, k_ref, v_ref,
                 wq_ref, bq_ref, wm_ref, bm_ref,
                 g1_ref, be1_ref, w1_ref, bf1_ref, w2_ref, bf2_ref,
                 g2_ref, be2_ref, o_ref):
    """K/V pre-projected in the wrapper: no scratch, no qi dependence, fully parallel grid."""
    _attention_ffn(y_ref, k_ref[...], v_ref[...],
                   wq_ref, bq_ref, wm_ref, bm_ref,
                   g1_ref, be1_ref, w1_ref, bf1_ref, w2_ref, bf2_ref,
                   g2_ref, be2_ref, o_ref)


@functools.lru_cache(maxsize=None)
def _buffered_one_supported():
    """Probe once whether pipeline_mode=pl.Buffered(1) works on this jax/libtpu build."""
    try:
        def k(a_ref, c_ref, o_ref):
            o_ref[...] = a_ref[...] + c_ref[...]
        f = pl.pallas_call(
            k,
            out_shape=jax.ShapeDtypeStruct((16, 128), jnp.float32),
            grid=(2,),
            in_specs=[pl.BlockSpec((8, 128), lambda i: (i, 0), pipeline_mode=pl.Buffered(1)),
                      pl.BlockSpec((8, 128), lambda i: (0, 0), pipeline_mode=pl.Buffered(1))],
            out_specs=pl.BlockSpec((8, 128), lambda i: (i, 0)))
        r = jax.block_until_ready(f(jnp.ones((16, 128), jnp.float32),
                                    jnp.full((8, 128), 2.0, jnp.float32)))
        return bool(jnp.allclose(r, 3.0))
    except Exception:
        return False


@functools.lru_cache(maxsize=None)
def _vmem_capacity_bytes():
    try:
        return int(pltpu.get_tpu_info().vmem_capacity_bytes)
    except Exception:
        return 64 * 1024 * 1024        # conservative: v7x per-TensorCore VMEM


def _pick_q_block(sy, sx, bb):
    """Largest q tile that divides Sy, keeps the f32 score/prob temporaries
    (2*bb*q*Sx*4 bytes) under ~12 MiB, and prefers >=256 rows per weight matmul."""
    budget = 12 * 1024 * 1024

    def fits(t):
        return 2 * bb * t * sx * 4 <= budget

    if sy <= 512 and fits(sy):
        return sy
    for t in (512, 256, 128, 64, 32, 16, 8):
        if sy % t == 0 and fits(t):
            return t
    return sy


def ga_forward(x, y, params, *, mxu_dtype=jnp.bfloat16, batch_block=None, q_block=None,
               hoist_kv=None, vmem_limit_bytes=None):
    """GA forward (eval mode).  x: (B, Sx, H), y: (B, Sy, H) -> (B, Sy, H) float32.

    mxu_dtype: dtype fed to the MXU (weights + matmul operands); bf16 default, f32 acc.
    hoist_kv:  None (auto) / bool.  When True, K/V projections run as plain XLA matmuls in
               the wrapper and the kernel grid is fully parallel (auto-enabled when the
               batch axis alone cannot give v7x's second TensorCore work).
    """
    B, Sx, H = x.shape
    By, Sy, Hy = y.shape
    assert By == B and Hy == H
    assert H > 1, "unbiased std divides by (H - 1); H must be > 1"

    mxu_dtype = jnp.dtype(mxu_dtype)
    f32 = jnp.float32
    w_item = mxu_dtype.itemsize

    # --- grid shape -----------------------------------------------------------------
    if batch_block is None:
        # Fuse tiny batches to feed the MXU, but keep >=2 steps on the parallel (batch)
        # axis whenever B >= 2 so v7x's two TensorCores both get work.
        tiny = B * (Sx + 2 * Sy) * H * 4 <= 2 * 1024 * 1024
        cand = B if tiny else 1
        if B >= 2:
            cand = min(cand, max(B // 2, 1))
        if cand > 1 and not (Sx % 8 == 0 and Sy % 8 == 0):
            cand = 1                         # batch fusion needs 8-row aligned tiles
        while B % cand != 0:
            cand -= 1
        batch_block = cand
    if q_block is None:
        q_block = _pick_q_block(Sy, Sx, batch_block)
    assert B % batch_block == 0 and Sy % q_block == 0
    if batch_block > 1:
        assert Sx % 8 == 0 and q_block % 8 == 0, "batch fusion needs 8-row aligned tiles"
    nb, nq = B // batch_block, Sy // q_block

    if hoist_kv is None:
        # Hoist K/V out of the kernel when the batch axis alone cannot give the second
        # TensorCore work but the q axis can (removes the qi==0 scratch dependency).
        hoist_kv = (nb < 2) and (nq >= 2)

    buffered_ok = _buffered_one_supported()

    # --- parameter preprocessing (host/XLA side, free) --------------------------------
    # Pre-transpose every (H,H) weight (kernel contracts x @ W_t, no in-kernel transpose),
    # fold 1/sqrt(H) into the q projection, cast matmul weights to the MXU dtype.
    scale = 1.0 / math.sqrt(H)
    wv_t = params["wv"].T.astype(mxu_dtype)
    wk_t = params["wk"].T.astype(mxu_dtype)
    wq_t = (params["wq"].T * scale).astype(mxu_dtype)
    wm_t = params["wm"].T.astype(mxu_dtype)
    w1_t = params["w1"].T.astype(mxu_dtype)
    w2_t = params["w2"].T.astype(mxu_dtype)
    bq_s = (params["bq"] * scale).astype(f32)
    bv = params["bv"].astype(f32)
    bm = params["bm"].astype(f32)
    bf1 = params["bf1"].astype(f32)
    bf2 = params["bf2"].astype(f32)
    g1, be1 = params["g1"].astype(f32), params["be1"].astype(f32)
    g2, be2 = params["g2"].astype(f32), params["be2"].astype(f32)
    # NOTE: bk is intentionally not passed (softmax-invariant, see ga_kernel_fused).

    # --- BlockSpecs -------------------------------------------------------------------
    if buffered_ok:
        def const_spec(shape):        # constant-index operands: single-buffered
            return pl.BlockSpec(shape, lambda bi, qi: (0, 0), pipeline_mode=pl.Buffered(1))
    else:
        def const_spec(shape):
            return pl.BlockSpec(shape, lambda bi, qi: (0, 0))
    w_spec, b_spec = const_spec((H, H)), const_spec((1, H))

    def batch_const_spec(shape):
        # Operands constant across the q axis (x, or hoisted K/V): single-buffer them
        # when there are multiple q tiles (saves a full Sx*H VMEM buffer).
        if buffered_ok and nq >= 2:
            return pl.BlockSpec(shape, lambda bi, qi: (bi, 0, 0), pipeline_mode=pl.Buffered(1))
        return pl.BlockSpec(shape, lambda bi, qi: (bi, 0, 0))

    y_spec = pl.BlockSpec((batch_block, q_block, H), lambda bi, qi: (bi, qi, 0))
    o_spec = pl.BlockSpec((batch_block, q_block, H), lambda bi, qi: (bi, qi, 0))

    # --- VMEM budget (generation-aware) -------------------------------------------------
    cap = _vmem_capacity_bytes()
    ceiling = int(cap * 0.8)          # ~51 MiB on v7x (64 MiB), ~102 MiB on v5e/v6e (128 MiB)
    kv_bufs = 1 if (buffered_ok and nq >= 2) else 2
    need = (6 * H * H * w_item * (1 if buffered_ok else 2)          # weights
            + 14 * H * 4                                            # biases / LN params
            + 2 * batch_block * q_block * H * 4 * 2                 # y + o (double-buffered)
            + 2 * batch_block * q_block * Sx * 4                    # scores + probs
            + 8 * batch_block * q_block * H * 4)                    # f32 temporaries
    if hoist_kv:
        need += 2 * batch_block * Sx * H * w_item * kv_bufs         # K/V input blocks
    else:
        need += (batch_block * Sx * H * 4 * kv_bufs                 # x input block
                 + 2 * batch_block * Sx * H * w_item)               # K/V scratch
    if vmem_limit_bytes is None:
        vmem_limit_bytes = min(ceiling, max(need + 8 * 1024 * 1024, 32 * 1024 * 1024))
    vmem_limit_bytes = int(vmem_limit_bytes)

    # --- cost estimate -------------------------------------------------------------------
    kv_flops = 0 if hoist_kv else 4 * B * Sx * H * H
    cost = pl.CostEstimate(
        flops=int(kv_flops + 8 * B * Sy * H * H + 4 * B * Sy * Sx * H),
        transcendentals=int(B * Sy * Sx + 4 * B * Sy),
        bytes_accessed=int(4 * (y.size + B * Sy * H) + 6 * H * H * w_item
                           + (2 * B * Sx * H * w_item if hoist_kv else 4 * x.size)),
    )

    if hoist_kv:
        # K/V projections as plain XLA matmuls (same numerics as the in-kernel path).
        xin = x.reshape(B * Sx, H).astype(mxu_dtype)
        k_in = jnp.dot(xin, wk_t, preferred_element_type=f32
                       ).reshape(B, Sx, H).astype(mxu_dtype)
        v_in = (jnp.dot(xin, wv_t, preferred_element_type=f32) + bv
                ).reshape(B, Sx, H).astype(mxu_dtype)
        kv_spec = batch_const_spec((batch_block, Sx, H))
        call = pl.pallas_call(
            ga_kernel_kv,
            out_shape=jax.ShapeDtypeStruct((B, Sy, H), jnp.float32),
            grid_spec=pltpu.PrefetchScalarGridSpec(
                num_scalar_prefetch=0,
                grid=(nb, nq),
                in_specs=[y_spec, kv_spec, kv_spec,
                          w_spec, b_spec, w_spec, b_spec,      # q proj, merge
                          b_spec, b_spec,                      # ln1
                          w_spec, b_spec, w_spec, b_spec,      # ffn
                          b_spec, b_spec],                     # ln2
                out_specs=o_spec),
            compiler_params=pltpu.CompilerParams(
                dimension_semantics=("parallel", "parallel"),
                vmem_limit_bytes=vmem_limit_bytes),
            cost_estimate=cost,
        )
        return call(y, k_in, v_in, wq_t, bq_s, wm_t, bm,
                    g1, be1, w1_t, bf1, w2_t, bf2, g2, be2)

    x_spec = batch_const_spec((batch_block, Sx, H))
    call = pl.pallas_call(
        ga_kernel_fused,
        out_shape=jax.ShapeDtypeStruct((B, Sy, H), jnp.float32),
        grid_spec=pltpu.PrefetchScalarGridSpec(
            num_scalar_prefetch=0,
            grid=(nb, nq),
            in_specs=[x_spec, y_spec,
                      w_spec, b_spec, w_spec,                  # v, k projections
                      w_spec, b_spec, w_spec, b_spec,          # q proj, merge
                      b_spec, b_spec,                          # ln1
                      w_spec, b_spec, w_spec, b_spec,          # ffn
                      b_spec, b_spec],                         # ln2
            out_specs=o_spec,
            scratch_shapes=[pltpu.VMEM((batch_block, Sx, H), mxu_dtype),   # K
                            pltpu.VMEM((batch_block, Sx, H), mxu_dtype)]), # V
        compiler_params=pltpu.CompilerParams(
            dimension_semantics=("parallel", "arbitrary"),
            vmem_limit_bytes=vmem_limit_bytes),
        cost_estimate=cost,
    )
    return call(x, y, wv_t, bv, wk_t, wq_t, bq_s, wm_t, bm,
                g1, be1, w1_t, bf1, w2_t, bf2, g2, be2)


def ga_reference(x, y, p):
    def ln(t, g, b):
        h = t.shape[-1]
        mean = jnp.mean(t, axis=-1, keepdims=True)
        std = jnp.sqrt(jnp.sum((t - mean) ** 2, axis=-1, keepdims=True) / (h - 1))
        return g * (t - mean) / (std + EPS) + b

    v = x @ p["wv"].T + p["bv"]
    k = x @ p["wk"].T + p["bk"]
    q = y @ p["wq"].T + p["bq"]
    s = q @ jnp.swapaxes(k, -1, -2) / math.sqrt(x.shape[-1])
    a = jax.nn.softmax(s, axis=-1)
    merged = (a @ v) @ p["wm"].T + p["bm"]
    y1 = ln(y + merged, p["g1"], p["be1"])
    ff = jnp.maximum(y1 @ p["w1"].T + p["bf1"], 0.0) @ p["w2"].T + p["bf2"]
    return ln(y1 + ff, p["g2"], p["be2"])


def init_params(key, H):
    names_w = ["wv", "wk", "wq", "wm", "w1", "w2"]
    names_b = ["bv", "bk", "bq", "bm", "bf1", "bf2"]
    params = {}
    keys = jax.random.split(key, len(names_w) + len(names_b))
    scale = 1.0 / math.sqrt(H)
    for i, n in enumerate(names_w):
        params[n] = jax.random.uniform(keys[i], (H, H), jnp.float32, -scale, scale)
    for i, n in enumerate(names_b):
        params[n] = jax.random.uniform(keys[len(names_w) + i], (1, H), jnp.float32, -scale, scale)
    # Layernorm params: a_2 = ones, b_2 = zeros (as in Layernorm.__init__)
    params["g1"] = jnp.ones((1, H), jnp.float32)
    params["be1"] = jnp.zeros((1, H), jnp.float32)
    params["g2"] = jnp.ones((1, H), jnp.float32)
    params["be2"] = jnp.zeros((1, H), jnp.float32)
    return params


if __name__ == "__main__":
    key = jax.random.PRNGKey(0)
    kx, ky, kp = jax.random.split(key, 3)

    # Lane-dense demo shapes (the real module uses H=768 = 6*128, also lane-dense).
    B, Sx, Sy, H = 2, 16, 8, 128
    x = jax.random.normal(kx, (B, Sx, H), jnp.float32)
    y = jax.random.normal(ky, (B, Sy, H), jnp.float32)
    params = init_params(kp, H)
    ref = ga_reference(x, y, params)

    # 1) Default path: bf16 MXU operands, f32 accumulation / softmax / layernorm.
    out = jax.block_until_ready(ga_forward(x, y, params))
    assert out.shape == (B, Sy, H)
    assert jnp.allclose(out, ref, atol=5e-2, rtol=5e-2), "bf16 (default) path mismatch"

    # 2) f32 MXU path (tolerance covers the approximate softmax reciprocal).
    out_f32 = jax.block_until_ready(ga_forward(x, y, params, mxu_dtype=jnp.float32))
    assert jnp.allclose(out_f32, ref, atol=1e-2, rtol=1e-2), "f32 path mismatch"

    # 3) Hoisted-K/V variant (fully parallel grid), f32.
    out_h = jax.block_until_ready(
        ga_forward(x, y, params, mxu_dtype=jnp.float32, hoist_kv=True))
    assert jnp.allclose(out_h, ref, atol=1e-2, rtol=1e-2), "hoisted-K/V path mismatch"

    # 4) Multiple q tiles on the fused path (exercises persistent K/V scratch across qi).
    Sy2 = 1024
    yq = jax.random.normal(ky, (B, Sy2, H), jnp.float32)
    refq = ga_reference(x, yq, params)
    outq = jax.block_until_ready(
        ga_forward(x, yq, params, mxu_dtype=jnp.float32, hoist_kv=False, q_block=512))
    assert jnp.allclose(outq, refq, atol=1e-2, rtol=1e-2), "q-tiled fused path mismatch"

    # 5) B == 1 with multiple q tiles -> automatic K/V hoist (parallel q axis), bf16 default.
    x1, y1 = x[:1], yq[:1]
    ref1 = ga_reference(x1, y1, params)
    out1 = jax.block_until_ready(ga_forward(x1, y1, params))
    assert jnp.allclose(out1, ref1, atol=5e-2, rtol=5e-2), "auto-hoist path mismatch"

    # 6) Non-lane-dense hidden size still works (blocks equal full array dims).
    Hs = 32
    xs = jax.random.normal(kx, (B, Sx, Hs), jnp.float32)
    ys = jax.random.normal(ky, (B, Sy, Hs), jnp.float32)
    ps = init_params(kp, Hs)
    outs = jax.block_until_ready(ga_forward(xs, ys, ps, mxu_dtype=jnp.float32))
    assert jnp.allclose(outs, ga_reference(xs, ys, ps), atol=1e-2, rtol=1e-2), "H=32 mismatch"

    print("KERNEL_OK")
</pallas_src>

<mosaic_0001>
module attributes {stable_mosaic.version = 11 : i64} {
  func.func @k(%arg0: i32, %arg1: memref<8x128xf32, #tpu.memory_space<vmem>>, %arg2: memref<8x128xf32, #tpu.memory_space<vmem>>, %arg3: memref<8x128xf32, #tpu.memory_space<vmem>>) attributes {dimension_semantics = [#tpu.dimension_semantics<arbitrary>], iteration_bounds = array<i64: 2>, scalar_prefetch = 0 : i64, scratch_operands = 0 : i64, tpu.core_type = #tpu.core_type<tc>, window_params = [{pipeline_mode = #tpu.pipeline_mode<synchronous>, transform_indices = @transform_0, window_bounds = array<i64: 8, 128>}, {pipeline_mode = #tpu.pipeline_mode<synchronous>, transform_indices = @transform_1, window_bounds = array<i64: 8, 128>}, {transform_indices = @transform_2, window_bounds = array<i64: 8, 128>}]} {
    %c0 = arith.constant 0 : index
    %c0_0 = arith.constant 0 : index
    %0 = vector.load %arg1[%c0, %c0_0] : memref<8x128xf32, #tpu.memory_space<vmem>>, vector<8x128xf32>
    %c0_1 = arith.constant 0 : index
    %c0_2 = arith.constant 0 : index
    %1 = vector.load %arg2[%c0_1, %c0_2] : memref<8x128xf32, #tpu.memory_space<vmem>>, vector<8x128xf32>
    %2 = arith.addf %0, %1 : vector<8x128xf32>
    %c0_3 = arith.constant 0 : index
    %c0_4 = arith.constant 0 : index
    %3 = vector.load %arg3[%c0_3, %c0_4] : memref<8x128xf32, #tpu.memory_space<vmem>>, vector<8x128xf32>
    tpu.vector_store %arg3[%c0_3, %c0_4], %2 {strides = array<i32>} : memref<8x128xf32, #tpu.memory_space<vmem>>, vector<8x128xf32>,
    return
  }
  func.func @transform_0(%arg0: i32) -> (i32, i32) {
    %c0_i32 = arith.constant 0 : i32
    %c0_i32_0 = arith.constant 0 : i32
    return %arg0, %c0_i32 : i32, i32
  }
  func.func @transform_1(%arg0: i32) -> (i32, i32) {
    %c0_i32 = arith.constant 0 : i32
    %c0_i32_0 = arith.constant 0 : i32
    %c0_i32_1 = arith.constant 0 : i32
    return %c0_i32, %c0_i32_0 : i32, i32
  }
  func.func @transform_2(%arg0: i32) -> (i32, i32) {
    %c0_i32 = arith.constant 0 : i32
    %c0_i32_0 = arith.constant 0 : i32
    return %arg0, %c0_i32 : i32, i32
  }
}

module attributes {stable_mosaic.version = 11 : i64} {
  func.func @ga_kernel_fused(%arg0: i32, %arg1: i32, %arg2: memref<1x16x128xf32, #tpu.memory_space<vmem>>, %arg3: memref<1x8x128xf32, #tpu.memory_space<vmem>>, %arg4: memref<128x128xbf16, #tpu.memory_space<vmem>>, %arg5: memref<1x128xf32, #tpu.memory_space<vmem>>, %arg6: memref<128x128xbf16, #tpu.memory_space<vmem>>, %arg7: memref<128x128xbf16, #tpu.memory_space<vmem>>, %arg8: memref<1x128xf32, #tpu.memory_space<vmem>>, %arg9: memref<128x128xbf16, #tpu.memory_space<vmem>>, %arg10: memref<1x128xf32, #tpu.memory_space<vmem>>, %arg11: memref<1x128xf32, #tpu.memory_space<vmem>>, %arg12: memref<1x128xf32, #tpu.memory_space<vmem>>, %arg13: memref<128x128xbf16, #tpu.memory_space<vmem>>, %arg14: memref<1x128xf32, #tpu.memory_space<vmem>>, %arg15: memref<128x128xbf16, #tpu.memory_space<vmem>>, %arg16: memref<1x128xf32, #tpu.memory_space<vmem>>, %arg17: memref<1x128xf32, #tpu.memory_space<vmem>>, %arg18: memref<1x128xf32, #tpu.memory_space<vmem>>, %arg19: memref<1x8x128xf32, #tpu.memory_space<vmem>>, %arg20: memref<1x16x128xbf16, #tpu.memory_space<vmem>>, %arg21: memref<1x16x128xbf16, #tpu.memory_space<vmem>>) attributes {dimension_semantics = [#tpu.dimension_semantics<parallel>, #tpu.dimension_semantics<arbitrary>], iteration_bounds = array<i64: 2, 1>, scalar_prefetch = 0 : i64, scratch_operands = 2 : i64, tpu.core_type = #tpu.core_type<tc>, window_params = [{transform_indices = @transform_0, window_bounds = array<i64: 1, 16, 128>}, {transform_indices = @transform_1, window_bounds = array<i64: 1, 8, 128>}, {pipeline_mode = #tpu.pipeline_mode<synchronous>, transform_indices = @transform_2, window_bounds = array<i64: 128, 128>}, {pipeline_mode = #tpu.pipeline_mode<synchronous>, transform_indices = @transform_3, window_bounds = array<i64: 1, 128>}, {pipeline_mode = #tpu.pipeline_mode<synchronous>, transform_indices = @transform_4, window_bounds = array<i64: 128, 128>}, {pipeline_mode = #tpu.pipeline_mode<synchronous>, transform_indices = @transform_5, window_bounds = array<i64: 128, 128>}, {pipeline_mode = #tpu.pipeline_mode<synchronous>, transform_indices = @transform_6, window_bounds = array<i64: 1, 128>}, {pipeline_mode = #tpu.pipeline_mode<synchronous>, transform_indices = @transform_7, window_bounds = array<i64: 128, 128>}, {pipeline_mode = #tpu.pipeline_mode<synchronous>, transform_indices = @transform_8, window_bounds = array<i64: 1, 128>}, {pipeline_mode = #tpu.pipeline_mode<synchronous>, transform_indices = @transform_9, window_bounds = array<i64: 1, 128>}, {pipeline_mode = #tpu.pipeline_mode<synchronous>, transform_indices = @transform_10, window_bounds = array<i64: 1, 128>}, {pipeline_mode = #tpu.pipeline_mode<synchronous>, transform_indices = @transform_11, window_bounds = array<i64: 128, 128>}, {pipeline_mode = #tpu.pipeline_mode<synchronous>, transform_indices = @transform_12, window_bounds = array<i64: 1, 128>}, {pipeline_mode = #tpu.pipeline_mode<synchronous>, transform_indices = @transform_13, window_bounds = array<i64: 128, 128>}, {pipeline_mode = #tpu.pipeline_mode<synchronous>, transform_indices = @transform_14, window_bounds = array<i64: 1, 128>}, {pipeline_mode = #tpu.pipeline_mode<synchronous>, transform_indices = @transform_15, window_bounds = array<i64: 1, 128>}, {pipeline_mode = #tpu.pipeline_mode<synchronous>, transform_indices = @transform_16, window_bounds = array<i64: 1, 128>}, {transform_indices = @transform_17, window_bounds = array<i64: 1, 8, 128>}]} {
    %c0_i32 = arith.constant 0 : i32
    %0 = arith.cmpi eq, %arg1, %c0_i32 : i32
    %1 = arith.extui %0 : i1 to i32
    %c0_i32_0 = arith.constant 0 : i32
    %2 = arith.cmpi ne, %1, %c0_i32_0 : i32
    scf.if %2 {
      %c0_56 = arith.constant 0 : index
      %c0_57 = arith.constant 0 : index
      %c0_58 = arith.constant 0 : index
      %105 = vector.load %arg2[%c0_56, %c0_57, %c0_58] : memref<1x16x128xf32, #tpu.memory_space<vmem>>, vector<1x16x128xf32>
      %106 = vector.shape_cast %105 : vector<1x16x128xf32> to vector<16x128xf32>
      %107 = arith.truncf %106 : vector<16x128xf32> to vector<16x128xbf16>
      %c0_59 = arith.constant 0 : index
      %c0_60 = arith.constant 0 : index
      %108 = vector.load %arg6[%c0_59, %c0_60] : memref<128x128xbf16, #tpu.memory_space<vmem>>, vector<128x128xbf16>
      %cst_61 = arith.constant dense<0.000000e+00> : vector<16x128xf32>
      %109 = tpu.matmul %107, %108, %cst_61 {dimension_numbers = #tpu.dot_dimension_numbers<[1], [0], [0], [1], [0, 0, 1, 1], [], []>} : vector<16x128xbf16>, vector<128x128xbf16>, vector<16x128xf32> -> vector<16x128xf32>
      %c0_62 = arith.constant 0 : index
      %c0_63 = arith.constant 0 : index
      %110 = vector.load %arg4[%c0_62, %c0_63] : memref<128x128xbf16, #tpu.memory_space<vmem>>, vector<128x128xbf16>
      %cst_64 = arith.constant dense<0.000000e+00> : vector<16x128xf32>
      %111 = tpu.matmul %107, %110, %cst_64 {dimension_numbers = #tpu.dot_dimension_numbers<[1], [0], [0], [1], [0, 0, 1, 1], [], []>} : vector<16x128xbf16>, vector<128x128xbf16>, vector<16x128xf32> -> vector<16x128xf32>
      %c0_65 = arith.constant 0 : index
      %c0_66 = arith.constant 0 : index
      %112 = vector.load %arg5[%c0_65, %c0_66] : memref<1x128xf32, #tpu.memory_space<vmem>>, vector<1x128xf32>
      %113 = vector.broadcast %112 : vector<1x128xf32> to vector<16x128xf32>
      %114 = arith.addf %111, %113 : vector<16x128xf32>
      %115 = vector.shape_cast %109 : vector<16x128xf32> to vector<1x16x128xf32>
      %116 = arith.truncf %115 : vector<1x16x128xf32> to vector<1x16x128xbf16>
      %c0_67 = arith.constant 0 : index
      %c0_68 = arith.constant 0 : index
      %c0_69 = arith.constant 0 : index
      %117 = vector.load %arg20[%c0_67, %c0_68, %c0_69] : memref<1x16x128xbf16, #tpu.memory_space<vmem>>, vector<1x16x128xbf16>
      tpu.vector_store %arg20[%c0_67, %c0_68, %c0_69], %116 {strides = array<i32>} : memref<1x16x128xbf16, #tpu.memory_space<vmem>>, vector<1x16x128xbf16>,
      %118 = vector.shape_cast %114 : vector<16x128xf32> to vector<1x16x128xf32>
      %119 = arith.truncf %118 : vector<1x16x128xf32> to vector<1x16x128xbf16>
      %c0_70 = arith.constant 0 : index
      %c0_71 = arith.constant 0 : index
      %c0_72 = arith.constant 0 : index
      %120 = vector.load %arg21[%c0_70, %c0_71, %c0_72] : memref<1x16x128xbf16, #tpu.memory_space<vmem>>, vector<1x16x128xbf16>
      tpu.vector_store %arg21[%c0_70, %c0_71, %c0_72], %119 {strides = array<i32>} : memref<1x16x128xbf16, #tpu.memory_space<vmem>>, vector<1x16x128xbf16>,
    } else {
    }
    %c0 = arith.constant 0 : index
    %c0_1 = arith.constant 0 : index
    %c0_2 = arith.constant 0 : index
    %3 = vector.load %arg20[%c0, %c0_1, %c0_2] : memref<1x16x128xbf16, #tpu.memory_space<vmem>>, vector<1x16x128xbf16>
    %c0_3 = arith.constant 0 : index
    %c0_4 = arith.constant 0 : index
    %c0_5 = arith.constant 0 : index
    %4 = vector.load %arg21[%c0_3, %c0_4, %c0_5] : memref<1x16x128xbf16, #tpu.memory_space<vmem>>, vector<1x16x128xbf16>
    %c0_6 = arith.constant 0 : index
    %c0_7 = arith.constant 0 : index
    %c0_8 = arith.constant 0 : index
    %5 = vector.load %arg3[%c0_6, %c0_7, %c0_8] : memref<1x8x128xf32, #tpu.memory_space<vmem>>, vector<1x8x128xf32>
    %6 = vector.shape_cast %5 : vector<1x8x128xf32> to vector<8x128xf32>
    %7 = arith.truncf %6 : vector<8x128xf32> to vector<8x128xbf16>
    %c0_9 = arith.constant 0 : index
    %c0_10 = arith.constant 0 : index
    %8 = vector.load %arg7[%c0_9, %c0_10] : memref<128x128xbf16, #tpu.memory_space<vmem>>, vector<128x128xbf16>
    %cst = arith.constant dense<0.000000e+00> : vector<8x128xf32>
    %9 = tpu.matmul %7, %8, %cst {dimension_numbers = #tpu.dot_dimension_numbers<[1], [0], [0], [1], [0, 0, 1, 1], [], []>} : vector<8x128xbf16>, vector<128x128xbf16>, vector<8x128xf32> -> vector<8x128xf32>
    %c0_11 = arith.constant 0 : index
    %c0_12 = arith.constant 0 : index
    %10 = vector.load %arg8[%c0_11, %c0_12] : memref<1x128xf32, #tpu.memory_space<vmem>>, vector<1x128xf32>
    %11 = vector.broadcast %10 : vector<1x128xf32> to vector<8x128xf32>
    %12 = arith.addf %9, %11 : vector<8x128xf32>
    %13 = vector.shape_cast %12 : vector<8x128xf32> to vector<1x8x128xf32>
    %14 = arith.truncf %13 : vector<1x8x128xf32> to vector<1x8x128xbf16>
    "tpu.trace_start"() <{level = 10 : i32, message = "bqh,bkh->bqk"}> : () -> ()
    %cst_13 = arith.constant dense<0.000000e+00> : vector<1x8x16xf32>
    %15 = tpu.matmul %14, %3, %cst_13 {dimension_numbers = #tpu.dot_dimension_numbers<[2], [2], [1], [1], [0, 0, 0, 1, 1, 1], [0], [0]>} : vector<1x8x128xbf16>, vector<1x16x128xbf16>, vector<1x8x16xf32> -> vector<1x8x16xf32>
    "tpu.trace_stop"() : () -> ()
    %cst_14 = arith.constant dense<0xFF800000> : vector<1x8xf32>
    %16 = vector.multi_reduction <maximumf>, %15, %cst_14 [2] : vector<1x8x16xf32> to vector<1x8xf32>
    %17 = vector.shape_cast %16 : vector<1x8xf32> to vector<1x8x1xf32>
    %18 = vector.broadcast %17 : vector<1x8x1xf32> to vector<1x8x16xf32>
    %19 = arith.subf %15, %18 : vector<1x8x16xf32>
    %20 = math.exp %19 : vector<1x8x16xf32>
    %cst_15 = arith.constant dense<0.000000e+00> : vector<1x8xf32>
    %21 = vector.multi_reduction <add>, %20, %cst_15 [2] : vector<1x8x16xf32> to vector<1x8xf32>
    %22 = vector.shape_cast %21 : vector<1x8xf32> to vector<1x8x1xf32>
    %23 = tpu.reciprocal %22 {approx = true} : vector<1x8x1xf32> -> vector<1x8x1xf32>
    %24 = vector.broadcast %23 : vector<1x8x1xf32> to vector<1x8x16xf32>
    %25 = arith.mulf %20, %24 : vector<1x8x16xf32>
    %26 = arith.truncf %25 : vector<1x8x16xf32> to vector<1x8x16xbf16>
    "tpu.trace_start"() <{level = 10 : i32, message = "bqk,bkh->bqh"}> : () -> ()
    %cst_16 = arith.constant dense<0.000000e+00> : vector<1x8x128xf32>
    %27 = tpu.matmul %26, %4, %cst_16 {dimension_numbers = #tpu.dot_dimension_numbers<[2], [1], [1], [2], [0, 0, 0, 1, 1, 2], [0], [0]>} : vector<1x8x16xbf16>, vector<1x16x128xbf16>, vector<1x8x128xf32> -> vector<1x8x128xf32>
    "tpu.trace_stop"() : () -> ()
    %28 = vector.shape_cast %27 : vector<1x8x128xf32> to vector<8x128xf32>
    %29 = arith.truncf %28 : vector<8x128xf32> to vector<8x128xbf16>
    %c0_17 = arith.constant 0 : index
    %c0_18 = arith.constant 0 : index
    %30 = vector.load %arg9[%c0_17, %c0_18] : memref<128x128xbf16, #tpu.memory_space<vmem>>, vector<128x128xbf16>
    %cst_19 = arith.constant dense<0.000000e+00> : vector<8x128xf32>
    %31 = tpu.matmul %29, %30, %cst_19 {dimension_numbers = #tpu.dot_dimension_numbers<[1], [0], [0], [1], [0, 0, 1, 1], [], []>} : vector<8x128xbf16>, vector<128x128xbf16>, vector<8x128xf32> -> vector<8x128xf32>
    %c0_20 = arith.constant 0 : index
    %c0_21 = arith.constant 0 : index
    %32 = vector.load %arg10[%c0_20, %c0_21] : memref<1x128xf32, #tpu.memory_space<vmem>>, vector<1x128xf32>
    %33 = vector.broadcast %32 : vector<1x128xf32> to vector<8x128xf32>
    %34 = arith.addf %31, %33 : vector<8x128xf32>
    %35 = arith.addf %6, %34 : vector<8x128xf32>
    %c0_22 = arith.constant 0 : index
    %c0_23 = arith.constant 0 : index
    %36 = vector.load %arg11[%c0_22, %c0_23] : memref<1x128xf32, #tpu.memory_space<vmem>>, vector<1x128xf32>
    %c0_24 = arith.constant 0 : index
    %c0_25 = arith.constant 0 : index
    %37 = vector.load %arg12[%c0_24, %c0_25] : memref<1x128xf32, #tpu.memory_space<vmem>>, vector<1x128xf32>
    %cst_26 = arith.constant dense<0.000000e+00> : vector<8xf32>
    %38 = vector.multi_reduction <add>, %35, %cst_26 [1] : vector<8x128xf32> to vector<8xf32>
    %39 = vector.shape_cast %38 : vector<8xf32> to vector<8x1xf32>
    %cst_27 = arith.constant 1.280000e+02 : f32
    %40 = vector.broadcast %cst_27 : f32 to vector<8x1xf32>
    %41 = arith.divf %39, %40 : vector<8x1xf32>
    %42 = vector.broadcast %41 : vector<8x1xf32> to vector<8x128xf32>
    %43 = arith.subf %35, %42 : vector<8x128xf32>
    %44 = arith.mulf %43, %43 : vector<8x128xf32>
    %cst_28 = arith.constant dense<0.000000e+00> : vector<8xf32>
    %45 = vector.multi_reduction <add>, %44, %cst_28 [1] : vector<8x128xf32> to vector<8xf32>
    %46 = vector.shape_cast %45 : vector<8xf32> to vector<8x1xf32>
    %cst_29 = arith.constant 0.00787401571 : f32
    %47 = vector.broadcast %cst_29 : f32 to vector<8x1xf32>
    %48 = arith.mulf %46, %47 : vector<8x1xf32>
    %49 = math.sqrt %48 : vector<8x1xf32>
    %cst_30 = arith.constant 9.99999997E-7 : f32
    %50 = vector.broadcast %cst_30 : f32 to vector<8x1xf32>
    %51 = arith.addf %49, %50 : vector<8x1xf32>
    %cst_31 = arith.constant 1.000000e+00 : f32
    %52 = vector.broadcast %cst_31 : f32 to vector<8x1xf32>
    %53 = arith.divf %52, %51 : vector<8x1xf32>
    %54 = vector.broadcast %41 : vector<8x1xf32> to vector<8x128xf32>
    %55 = arith.subf %35, %54 : vector<8x128xf32>
    %56 = vector.broadcast %53 : vector<8x1xf32> to vector<8x128xf32>
    %57 = arith.mulf %55, %56 : vector<8x128xf32>
    %58 = vector.broadcast %36 : vector<1x128xf32> to vector<8x128xf32>
    %59 = arith.mulf %57, %58 : vector<8x128xf32>
    %60 = vector.broadcast %37 : vector<1x128xf32> to vector<8x128xf32>
    %61 = arith.addf %59, %60 : vector<8x128xf32>
    %62 = arith.truncf %61 : vector<8x128xf32> to vector<8x128xbf16>
    %c0_32 = arith.constant 0 : index
    %c0_33 = arith.constant 0 : index
    %63 = vector.load %arg13[%c0_32, %c0_33] : memref<128x128xbf16, #tpu.memory_space<vmem>>, vector<128x128xbf16>
    %cst_34 = arith.constant dense<0.000000e+00> : vector<8x128xf32>
    %64 = tpu.matmul %62, %63, %cst_34 {dimension_numbers = #tpu.dot_dimension_numbers<[1], [0], [0], [1], [0, 0, 1, 1], [], []>} : vector<8x128xbf16>, vector<128x128xbf16>, vector<8x128xf32> -> vector<8x128xf32>
    %c0_35 = arith.constant 0 : index
    %c0_36 = arith.constant 0 : index
    %65 = vector.load %arg14[%c0_35, %c0_36] : memref<1x128xf32, #tpu.memory_space<vmem>>, vector<1x128xf32>
    %66 = vector.broadcast %65 : vector<1x128xf32> to vector<8x128xf32>
    %67 = arith.addf %64, %66 : vector<8x128xf32>
    %cst_37 = arith.constant 0.000000e+00 : f32
    %68 = vector.broadcast %cst_37 : f32 to vector<8x128xf32>
    %69 = arith.maximumf %67, %68 : vector<8x128xf32>
    %70 = arith.truncf %69 : vector<8x128xf32> to vector<8x128xbf16>
    %c0_38 = arith.constant 0 : index
    %c0_39 = arith.constant 0 : index
    %71 = vector.load %arg15[%c0_38, %c0_39] : memref<128x128xbf16, #tpu.memory_space<vmem>>, vector<128x128xbf16>
    %cst_40 = arith.constant dense<0.000000e+00> : vector<8x128xf32>
    %72 = tpu.matmul %70, %71, %cst_40 {dimension_numbers = #tpu.dot_dimension_numbers<[1], [0], [0], [1], [0, 0, 1, 1], [], []>} : vector<8x128xbf16>, vector<128x128xbf16>, vector<8x128xf32> -> vector<8x128xf32>
    %c0_41 = arith.constant 0 : index
    %c0_42 = arith.constant 0 : index
    %73 = vector.load %arg16[%c0_41, %c0_42] : memref<1x128xf32, #tpu.memory_space<vmem>>, vector<1x128xf32>
    %74 = vector.broadcast %73 : vector<1x128xf32> to vector<8x128xf32>
    %75 = arith.addf %72, %74 : vector<8x128xf32>
    %76 = arith.addf %61, %75 : vector<8x128xf32>
    %c0_43 = arith.constant 0 : index
    %c0_44 = arith.constant 0 : index
    %77 = vector.load %arg17[%c0_43, %c0_44] : memref<1x128xf32, #tpu.memory_space<vmem>>, vector<1x128xf32>
    %c0_45 = arith.constant 0 : index
    %c0_46 = arith.constant 0 : index
    %78 = vector.load %arg18[%c0_45, %c0_46] : memref<1x128xf32, #tpu.memory_space<vmem>>, vector<1x128xf32>
    %cst_47 = arith.constant dense<0.000000e+00> : vector<8xf32>
    %79 = vector.multi_reduction <add>, %76, %cst_47 [1] : vector<8x128xf32> to vector<8xf32>
    %80 = vector.shape_cast %79 : vector<8xf32> to vector<8x1xf32>
    %cst_48 = arith.constant 1.280000e+02 : f32
    %81 = vector.broadcast %cst_48 : f32 to vector<8x1xf32>
    %82 = arith.divf %80, %81 : vector<8x1xf32>
    %83 = vector.broadcast %82 : vector<8x1xf32> to vector<8x128xf32>
    %84 = arith.subf %76, %83 : vector<8x128xf32>
    %85 = arith.mulf %84, %84 : vector<8x128xf32>
    %cst_49 = arith.constant dense<0.000000e+00> : vector<8xf32>
    %86 = vector.multi_reduction <add>, %85, %cst_49 [1] : vector<8x128xf32> to vector<8xf32>
    %87 = vector.shape_cast %86 : vector<8xf32> to vector<8x1xf32>
    %cst_50 = arith.constant 0.00787401571 : f32
    %88 = vector.broadcast %cst_50 : f32 to vector<8x1xf32>
    %89 = arith.mulf %87, %88 : vector<8x1xf32>
    %90 = math.sqrt %89 : vector<8x1xf32>
    %cst_51 = arith.constant 9.99999997E-7 : f32
    %91 = vector.broadcast %cst_51 : f32 to vector<8x1xf32>
    %92 = arith.addf %90, %91 : vector<8x1xf32>
    %cst_52 = arith.constant 1.000000e+00 : f32
    %93 = vector.broadcast %cst_52 : f32 to vector<8x1xf32>
    %94 = arith.divf %93, %92 : vector<8x1xf32>
    %95 = vector.broadcast %82 : vector<8x1xf32> to vector<8x128xf32>
    %96 = arith.subf %76, %95 : vector<8x128xf32>
    %97 = vector.broadcast %94 : vector<8x1xf32> to vector<8x128xf32>
    %98 = arith.mulf %96, %97 : vector<8x128xf32>
    %99 = vector.broadcast %77 : vector<1x128xf32> to vector<8x128xf32>
    %100 = arith.mulf %98, %99 : vector<8x128xf32>
    %101 = vector.broadcast %78 : vector<1x128xf32> to vector<8x128xf32>
    %102 = arith.addf %100, %101 : vector<8x128xf32>
    %103 = vector.shape_cast %102 : vector<8x128xf32> to vector<1x8x128xf32>
    %c0_53 = arith.constant 0 : index
    %c0_54 = arith.constant 0 : index
    %c0_55 = arith.constant 0 : index
    %104 = vector.load %arg19[%c0_53, %c0_54, %c0_55] : memref<1x8x128xf32, #tpu.memory_space<vmem>>, vector<1x8x128xf32>
    tpu.vector_store %arg19[%c0_53, %c0_54, %c0_55], %103 {strides = array<i32>} : memref<1x8x128xf32, #tpu.memory_space<vmem>>, vector<1x8x128xf32>,
    return
  }
  func.func @transform_0(%arg0: i32, %arg1: i32) -> (i32, i32, i32) {
    %c0_i32 = arith.constant 0 : i32
    %c0_i32_0 = arith.constant 0 : i32
    %c0_i32_1 = arith.constant 0 : i32
    return %arg0, %c0_i32, %c0_i32_0 : i32, i32, i32
  }
  func.func @transform_1(%arg0: i32, %arg1: i32) -> (i32, i32, i32) {
    %c0_i32 = arith.constant 0 : i32
    %c0_i32_0 = arith.constant 0 : i32
    return %arg0, %arg1, %c0_i32 : i32, i32, i32
  }
  func.func @transform_2(%arg0: i32, %arg1: i32) -> (i32, i32) {
    %c0_i32 = arith.constant 0 : i32
    %c0_i32_0 = arith.constant 0 : i32
    %c0_i32_1 = arith.constant 0 : i32
    return %c0_i32, %c0_i32_0 : i32, i32
  }
  func.func @transform_3(%arg0: i32, %arg1: i32) -> (i32, i32) {
    %c0_i32 = arith.constant 0 : i32
    %c0_i32_0 = arith.constant 0 : i32
    %c0_i32_1 = arith.constant 0 : i32
    return %c0_i32, %c0_i32_0 : i32, i32
  }
  func.func @transform_4(%arg0: i32, %arg1: i32) -> (i32, i32) {
    %c0_i32 = arith.constant 0 : i32
    %c0_i32_0 = arith.constant 0 : i32
    %c0_i32_1 = arith.constant 0 : i32
    return %c0_i32, %c0_i32_0 : i32, i32
  }
  func.func @transform_5(%arg0: i32, %arg1: i32) -> (i32, i32) {
    %c0_i32 = arith.constant 0 : i32
    %c0_i32_0 = arith.constant 0 : i32
    %c0_i32_1 = arith.constant 0 : i32
    return %c0_i32, %c0_i32_0 : i32, i32
  }
  func.func @transform_6(%arg0: i32, %arg1: i32) -> (i32, i32) {
    %c0_i32 = arith.constant 0 : i32
    %c0_i32_0 = arith.constant 0 : i32
    %c0_i32_1 = arith.constant 0 : i32
    return %c0_i32, %c0_i32_0 : i32, i32
  }
  func.func @transform_7(%arg0: i32, %arg1: i32) -> (i32, i32) {
    %c0_i32 = arith.constant 0 : i32
    %c0_i32_0 = arith.constant 0 : i32
    %c0_i32_1 = arith.constant 0 : i32
    return %c0_i32, %c0_i32_0 : i32, i32
  }
  func.func @transform_8(%arg0: i32, %arg1: i32) -> (i32, i32) {
    %c0_i32 = arith.constant 0 : i32
    %c0_i32_0 = arith.constant 0 : i32
    %c0_i32_1 = arith.constant 0 : i32
    return %c0_i32, %c0_i32_0 : i32, i32
  }
  func.func @transform_9(%arg0: i32, %arg1: i32) -> (i32, i32) {
    %c0_i32 = arith.constant 0 : i32
    %c0_i32_0 = arith.constant 0 : i32
    %c0_i32_1 = arith.constant 0 : i32
    return %c0_i32, %c0_i32_0 : i32, i32
  }
  func.func @transform_10(%arg0: i32, %arg1: i32) -> (i32, i32) {
    %c0_i32 = arith.constant 0 : i32
    %c0_i32_0 = arith.constant 0 : i32
    %c0_i32_1 = arith.constant 0 : i32
    return %c0_i32, %c0_i32_0 : i32, i32
  }
  func.func @transform_11(%arg0: i32, %arg1: i32) -> (i32, i32) {
    %c0_i32 = arith.constant 0 : i32
    %c0_i32_0 = arith.constant 0 : i32
    %c0_i32_1 = arith.constant 0 : i32
    return %c0_i32, %c0_i32_0 : i32, i32
  }
  func.func @transform_12(%arg0: i32, %arg1: i32) -> (i32, i32) {
    %c0_i32 = arith.constant 0 : i32
    %c0_i32_0 = arith.constant 0 : i32
    %c0_i32_1 = arith.constant 0 : i32
    return %c0_i32, %c0_i32_0 : i32, i32
  }
  func.func @transform_13(%arg0: i32, %arg1: i32) -> (i32, i32) {
    %c0_i32 = arith.constant 0 : i32
    %c0_i32_0 = arith.constant 0 : i32
    %c0_i32_1 = arith.constant 0 : i32
    return %c0_i32, %c0_i32_0 : i32, i32
  }
  func.func @transform_14(%arg0: i32, %arg1: i32) -> (i32, i32) {
    %c0_i32 = arith.constant 0 : i32
    %c0_i32_0 = arith.constant 0 : i32
    %c0_i32_1 = arith.constant 0 : i32
    return %c0_i32, %c0_i32_0 : i32, i32
  }
  func.func @transform_15(%arg0: i32, %arg1: i32) -> (i32, i32) {
    %c0_i32 = arith.constant 0 : i32
    %c0_i32_0 = arith.constant 0 : i32
    %c0_i32_1 = arith.constant 0 : i32
    return %c0_i32, %c0_i32_0 : i32, i32
  }
  func.func @transform_16(%arg0: i32, %arg1: i32) -> (i32, i32) {
    %c0_i32 = arith.constant 0 : i32
    %c0_i32_0 = arith.constant 0 : i32
    %c0_i32_1 = arith.constant 0 : i32
    return %c0_i32, %c0_i32_0 : i32, i32
  }
  func.func @transform_17(%arg0: i32, %arg1: i32) -> (i32, i32, i32) {
    %c0_i32 = arith.constant 0 : i32
    %c0_i32_0 = arith.constant 0 : i32
    return %arg0, %arg1, %c0_i32 : i32, i32, i32
  }
}

</mosaic_0001>

<llo_original>
// kernel: tpu_custom_call.1
$region0: #{tpu_custom_call.1}
  #allocation0 [shape = 'u32[]', space=smem, size = 0x4, offset = 0x4, fixed_abs, tag = 'smem constant byte address 0x4 - core index']
  #allocation1 [shape = 'u32[144,128]{1,0:T(1,128)}', space=vmem, size = 0x12000, scoped, tag = 'internal scratch']
  %s0 = inlined_call_operand.hbm [shape: f32[16,128], index: 0, kind: input, shape index: {}]
  %s1 = inlined_call_operand.hbm [shape: f32[8,128], index: 1, kind: input, shape index: {}]
  %s2 = inlined_call_operand.hbm [shape: f32[16,128], index: 2, kind: output, shape index: {}]
  %s3 = sld [smem:[#allocation0]]
  $region49: #{tpu_custom_call.1} parent=0
    _
  %s5 = ssub.s32 1, %s3
  %s6 = scalar_select 0, %s5, %s3
  $region1: #{tpu_custom_call.1} parent=0
    #allocation2 [shape = 'u8[4096]{0}', space=vmem, size = 0x1000, scoped, tag = 'input window, operand 0, single buffered']
    #allocation3 [shape = 's32[2]{0}', space=sflag, size = 0x8, scoped, tag = 'scoped memory for tpu_custom_call.1']
    #allocation4 [shape = 's32[2]{0}', space=sflag, size = 0x8, scoped, tag = 'scoped memory for tpu_custom_call.1']
    #allocation5 [shape = 'u8[4096]{0}', space=vmem, size = 0x1000, scoped, tag = 'input window, operand 1, single buffered']
    #allocation6 [shape = 's32[1]{0}', space=sflag, size = 0x4, scoped, tag = 'scoped memory for tpu_custom_call.1']
    #allocation7 [shape = 'u8[8192]{0}', space=vmem, size = 0x2000, scoped, tag = 'output window, operand 0']
    %7 = vsyncpa [#allocation3], 0
    %8 = vsyncpa [#allocation6], 0
    %9 = vsyncpa [#allocation4], 0
    %s10 = scalar_lea.sflag [#allocation4], 1
    %11 = vsyncpa %s10, 0
    loop: start=0, step=1, limit=4
    $region2: #{tpu_custom_call.1} parent=1 // loop_pre_header
      _
    $region3: #{tpu_custom_call.1} parent=1 // loop_header
      %s13 = sphi 0, %s17
      %p14 = scmp.ge.s32.totalorder %s13, 4
      %s23 = sphi 0, %s25
      %s26 = sphi 0, %s23
      %s27 = sphi 0, %s26
      %s43 = sphi 0, %s27
      %s47 = sphi 0, %s47
      %s49 = sphi 0, %s47
      %s50 = sphi 0, %s49
      %s64 = sphi 0, %s50
      %s70 = sphi 0, %s72
      %s73 = sphi 0, %s70
      %s74 = sphi 0, %s73
      %s90 = sphi 0, %s74
    $region4: #{tpu_custom_call.1} parent=1 // loop_header_branch
      %16 = sbr.rel (%p14) target = $region8
    $region5: #{tpu_custom_call.1} parent=1 // loop_body
      %s18 = ssub.s32 %s13, 1
      %s19 = ssub.s32 %s13, 2
      %s20 = sadd.s32 %s13, 1
      %s21 = ssub.s32 %s13, %s20
      %p22 = scmp.eq.s32.totalorder %s21, 0
      %s24 = sadd.s32 %s23, 1
      %s25 = scalar_select %p22, %s23, %s24
      %p28 = pneg %p22
      %p29 = scmp.eq.s32.totalorder %s13, 1
      %p30 = por %p28, %p29
      %p31 = scmp.ne.s32.totalorder %s23, %s26
      %p32 = scmp.eq.s32.totalorder %s13, 0
      %p33 = por %p31, %p32
      %p34 = scmp.ne.s32.totalorder %s23, %s26
      %p35 = scmp.eq.s32.totalorder %s18, 1
      %p36 = por %p34, %p35
      %p37 = scmp.ne.s32.totalorder %s26, %s27
      %p38 = scmp.eq.s32.totalorder %s18, 0
      %p39 = por %p37, %p38
      %p40 = scmp.ne.s32.totalorder %s26, %s27
      %p41 = scmp.eq.s32.totalorder %s19, 1
      %p42 = por %p40, %p41
      %p44 = scmp.ne.s32.totalorder %s27, %s43
      %p45 = scmp.eq.s32.totalorder %s19, 0
      %p46 = por %p44, %p45
      %s48 = sadd.s32 %s47, 1
      %p51 = scmp.eq.s32.totalorder %s13, 1
      %p52 = scmp.ne.s32.totalorder %s47, %s49
      %p53 = scmp.eq.s32.totalorder %s13, 0
      %p54 = por %p52, %p53
      %p55 = scmp.ne.s32.totalorder %s47, %s49
      %p56 = scmp.eq.s32.totalorder %s18, 1
      %p57 = por %p55, %p56
      %p58 = scmp.ne.s32.totalorder %s49, %s50
      %p59 = scmp.eq.s32.totalorder %s18, 0
      %p60 = por %p58, %p59
      %p61 = scmp.ne.s32.totalorder %s49, %s50
      %p62 = scmp.eq.s32.totalorder %s19, 1
      %p63 = por %p61, %p62
      %p65 = scmp.ne.s32.totalorder %s50, %s64
      %p66 = scmp.eq.s32.totalorder %s19, 0
      %p67 = por %p65, %p66
      %s68 = ssub.s32 %s13, %s20
      %p69 = scmp.eq.s32.totalorder %s68, 0
      %s71 = sadd.s32 %s70, 1
      %s72 = scalar_select %p69, %s70, %s71
      %p75 = pneg %p69
      %p76 = scmp.eq.s32.totalorder %s13, 1
      %p77 = por %p75, %p76
      %p78 = scmp.ne.s32.totalorder %s70, %s73
      %p79 = scmp.eq.s32.totalorder %s13, 0
      %p80 = por %p78, %p79
      %p81 = scmp.ne.s32.totalorder %s70, %s73
      %p82 = scmp.eq.s32.totalorder %s18, 1
      %p83 = por %p81, %p82
      %p84 = scmp.ne.s32.totalorder %s73, %s74
      %p85 = scmp.eq.s32.totalorder %s18, 0
      %p86 = por %p84, %p85
      %p87 = scmp.ne.s32.totalorder %s73, %s74
      %p88 = scmp.eq.s32.totalorder %s19, 1
      %p89 = por %p87, %p88
      %p91 = scmp.ne.s32.totalorder %s74, %s90
      %p92 = scmp.eq.s32.totalorder %s19, 0
      %p93 = por %p91, %p92
      %p94 = scmp.le.s32.totalorder 1, %s13
      %p95 = scmp.lt.s32.totalorder %s13, 3
      %p96 = pnand %p94, %p95
      %p97 = pneg %p96
      // Predicated region
      $region9: #{tpu_custom_call.1} parent=5 // pred_check
        _
      $region10: #{tpu_custom_call.1} parent=5 // pred_check_branch
        %99 = sbr.rel (%p96) target = $region12
      $region11: #{tpu_custom_call.1} parent=5 // pred_region
        %s100 = ssub.s32 %s13, 1
        // Predicated region
        $region13: #{tpu_custom_call.1} parent=11 // pred_check
          %p101 = pneg %p39
        $region14: #{tpu_custom_call.1} parent=11 // pred_check_branch
          %103 = sbr.rel (%p101) target = $region16
        $region15: #{tpu_custom_call.1} parent=11 // pred_region
          %s105 = ssub.s32 128, 128
          %106 = vsyncadd [#allocation3], %s105
          %s107 = smul.addr %s18, 128
          %s108 = scalar_lea.hbm %s0, %s107
          %s110 = sshll.u32 [#allocation2], 4
          %s111 = int_to_ptr.vmem [resolvable:$true] %s110
          %113 = dma.hbm_to_vmem [thread:$0]  %s108, 128, %s111, [#allocation3]
        $region16: #{tpu_custom_call.1} parent=11 // pred_fallthru
          _
        // Predicated region
        $region17: #{tpu_custom_call.1} parent=11 // pred_check
          %p114 = pneg %p60
        $region18: #{tpu_custom_call.1} parent=11 // pred_check_branch
          %116 = sbr.rel (%p114) target = $region20
        $region19: #{tpu_custom_call.1} parent=11 // pred_region
          %s118 = ssub.s32 128, 128
          %119 = vsyncadd [#allocation6], %s118
          %s121 = sshll.u32 [#allocation5], 4
          %s122 = int_to_ptr.vmem [resolvable:$true] %s121
          %124 = dma.hbm_to_vmem [thread:$0]  %s1, 128, %s122, [#allocation6]
        $region20: #{tpu_custom_call.1} parent=11 // pred_fallthru
          _
      $region12: #{tpu_custom_call.1} parent=5 // pred_fallthru
        _
      %p125 = scmp.lt.s32.totalorder %s13, 2
      // Predicated region
      $region21: #{tpu_custom_call.1} parent=5 // pred_check
        %p126 = pneg %p125
      $region22: #{tpu_custom_call.1} parent=5 // pred_check_branch
        %128 = sbr.rel (%p126) target = $region24
      $region23: #{tpu_custom_call.1} parent=5 // pred_region
        _
      $region24: #{tpu_custom_call.1} parent=5 // pred_fallthru
        _
      %p129 = scmp.le.s32.totalorder 1, %s13
      %p130 = scmp.lt.s32.totalorder %s13, 3
      %p131 = pnand %p129, %p130
      %p132 = pneg %p131
      // Predicated region
      $region25: #{tpu_custom_call.1} parent=5 // pred_check
        _
      $region26: #{tpu_custom_call.1} parent=5 // pred_check_branch
        %134 = sbr.rel (%p131) target = $region28
      $region27: #{tpu_custom_call.1} parent=5 // pred_region
        %s135 = ssub.s32 %s13, 1
        // Predicated region
        $region29: #{tpu_custom_call.1} parent=27 // pred_check
          %p136 = pneg %p39
        $region30: #{tpu_custom_call.1} parent=27 // pred_check_branch
          %138 = sbr.rel (%p136) target = $region32
        $region31: #{tpu_custom_call.1} parent=27 // pred_region
          %139 = dma.done [#allocation3], 128
        $region32: #{tpu_custom_call.1} parent=27 // pred_fallthru
          _
        // Predicated region
        $region33: #{tpu_custom_call.1} parent=27 // pred_check
          %p140 = pneg %p60
        $region34: #{tpu_custom_call.1} parent=27 // pred_check_branch
          %142 = sbr.rel (%p140) target = $region36
        $region35: #{tpu_custom_call.1} parent=27 // pred_region
          %143 = dma.done [#allocation6], 128
        $region36: #{tpu_custom_call.1} parent=27 // pred_fallthru
          _
        %p144 = pneg %p39
        %p145 = pneg %p36
        %p146 = pneg %p60
        %p147 = pneg %p57
        %p148 = pneg %p86
        %p149 = pneg %p83
        %s150 = sand.u32 %s73, 1
        %s151 = scalar_lea.sflag [#allocation4], %s150
        %s152 = sand.u32 %s73, 1
        %s153 = smul.addr %s152, 8
        %s154 = scalar_lea.vmem [#allocation7], %s153
        %v155 = vld [vmem:[#allocation2] sm:$0xff]
        %v156 = vld [vmem:[#allocation5] sm:$0xff]
        %v157 = vadd.f32 %v155, %v156
        %158 = vst [vmem:[%s154] sm:$0xff] %v157
        %s159 = sand.u32 %s73, 1
        %s160 = scalar_lea.sflag [#allocation4], %s159
        %s161 = sand.u32 %s73, 1
        %s162 = smul.addr %s161, 8
        %s163 = scalar_lea.vmem [#allocation7], %s162
        // Predicated region
        $region37: #{tpu_custom_call.1} parent=27 // pred_check
          %p164 = pneg %p83
        $region38: #{tpu_custom_call.1} parent=27 // pred_check_branch
          %166 = sbr.rel (%p164) target = $region40
        $region39: #{tpu_custom_call.1} parent=27 // pred_region
          %s168 = ssub.s32 128, 128
          %169 = vsyncadd %s160, %s168
          %s170 = smul.addr %s18, 128
          %s171 = scalar_lea.hbm %s2, %s170
          %s173 = sshll.u32 %s163, 4
          %s174 = int_to_ptr.vmem [resolvable:$true] %s173
          %176 = dma.vmem_to_hbm [thread:$0]  %s174, 128, %s171, %s160
        $region40: #{tpu_custom_call.1} parent=27 // pred_fallthru
          _
      $region28: #{tpu_custom_call.1} parent=5 // pred_fallthru
        _
      %p177 = scmp.le.s32.totalorder 2, %s13
      // Predicated region
      $region41: #{tpu_custom_call.1} parent=5 // pred_check
        %p178 = pneg %p177
      $region42: #{tpu_custom_call.1} parent=5 // pred_check_branch
        %180 = sbr.rel (%p178) target = $region44
      $region43: #{tpu_custom_call.1} parent=5 // pred_region
        %s181 = ssub.s32 %s13, 2
        // Predicated region
        $region45: #{tpu_custom_call.1} parent=43 // pred_check
          %p182 = pneg %p89
        $region46: #{tpu_custom_call.1} parent=43 // pred_check_branch
          %184 = sbr.rel (%p182) target = $region48
        $region47: #{tpu_custom_call.1} parent=43 // pred_region
          %s185 = sand.u32 %s74, 1
          %s186 = scalar_lea.sflag [#allocation4], %s185
          %s187 = sand.u32 %s74, 1
          %s188 = smul.addr %s187, 8
          %s189 = scalar_lea.vmem [#allocation7], %s188
          %190 = dma.done %s186, 128
        $region48: #{tpu_custom_call.1} parent=43 // pred_fallthru
          _
      $region44: #{tpu_custom_call.1} parent=5 // pred_fallthru
        _
    $region6: #{tpu_custom_call.1} parent=1 // loop_footer
      %s17 = sadd.s32 1, %s13
    $region7: #{tpu_custom_call.1} parent=1 // loop_footer_branch
      %12 = sbr.rel target = $region3
    $region8: #{tpu_custom_call.1} parent=1 // loop_exit
      _
    %191 = vsyncpa [#allocation3], 1
    %s192 = scalar_lea.sflag [#allocation3], 1
    %193 = vsyncpa %s192, 1
    %194 = vsyncpa [#allocation6], 1
    %195 = vsyncpa [#allocation4], 1
    %s196 = scalar_lea.sflag [#allocation4], 1
    %197 = vsyncpa %s196, 1

// kernel: tpu_custom_call.1
$region0: #{tpu_custom_call.1}
  #allocation0 [shape = 'u32[]', space=smem, size = 0x4, offset = 0x4, fixed_abs, tag = 'smem constant byte address 0x4 - core index']
  #allocation1 [shape = 'u32[144,128]{1,0:T(1,128)}', space=vmem, size = 0x12000, scoped, tag = 'internal scratch']
  #allocation2 [shape = 'bf16[1,16,128]{2,1,0:T(8,128)(2,1)}', space=vmem, size = 0x1000, scoped, tag = 'scratch operand']
  #allocation3 [shape = 'bf16[1,16,128]{2,1,0:T(8,128)(2,1)}', space=vmem, size = 0x1000, scoped, tag = 'scratch operand']
  %s0 = inlined_call_operand.hbm [shape: f32[2,16,128], index: 0, kind: input, shape index: {}]
  %s1 = inlined_call_operand.hbm [shape: f32[2,8,128], index: 1, kind: input, shape index: {}]
  %s2 = inlined_call_operand.hbm [shape: bf16[128,128], index: 2, kind: input, shape index: {}]
  %s3 = inlined_call_operand.vmem [shape: f32[1,128], index: 3, kind: input, shape index: {}]
  %s4 = inlined_call_operand.hbm [shape: bf16[128,128], index: 4, kind: input, shape index: {}]
  %s5 = inlined_call_operand.hbm [shape: bf16[128,128], index: 5, kind: input, shape index: {}]
  %s6 = inlined_call_operand.vmem [shape: f32[1,128], index: 6, kind: input, shape index: {}]
  %s7 = inlined_call_operand.hbm [shape: bf16[128,128], index: 7, kind: input, shape index: {}]
  %s8 = inlined_call_operand.vmem [shape: f32[1,128], index: 8, kind: input, shape index: {}]
  %s9 = inlined_call_operand.vmem [shape: f32[1,128], index: 9, kind: input, shape index: {}]
  %s10 = inlined_call_operand.vmem [shape: f32[1,128], index: 10, kind: input, shape index: {}]
  %s11 = inlined_call_operand.hbm [shape: bf16[128,128], index: 11, kind: input, shape index: {}]
  %s12 = inlined_call_operand.vmem [shape: f32[1,128], index: 12, kind: input, shape index: {}]
  %s13 = inlined_call_operand.hbm [shape: bf16[128,128], index: 13, kind: input, shape index: {}]
  %s14 = inlined_call_operand.vmem [shape: f32[1,128], index: 14, kind: input, shape index: {}]
  %s15 = inlined_call_operand.vmem [shape: f32[1,128], index: 15, kind: input, shape index: {}]
  %s16 = inlined_call_operand.vmem [shape: f32[1,128], index: 16, kind: input, shape index: {}]
  %s17 = inlined_call_operand.hbm [shape: f32[2,8,128], index: 17, kind: output, shape index: {}]
  %s18 = sld [smem:[#allocation0]]
  $region137: #{tpu_custom_call.1} parent=0
    _
  %s20 = ssub.s32 1, %s18
  %s21 = scalar_select 0, %s20, %s18
  $region1: #{tpu_custom_call.1} parent=0
    #allocation4 [shape = 'u8[16384]{0}', space=vmem, size = 0x4000, scoped, tag = 'input window, operand 0']
    #allocation5 [shape = 's32[2]{0}', space=sflag, size = 0x8, scoped, tag = 'scoped memory for tpu_custom_call.1']
    #allocation6 [shape = 's32[2]{0}', space=sflag, size = 0x8, scoped, tag = 'scoped memory for tpu_custom_call.1']
    #allocation7 [shape = 'u8[8192]{0}', space=vmem, size = 0x2000, scoped, tag = 'input window, operand 1']
    #allocation8 [shape = 's32[2]{0}', space=sflag, size = 0x8, scoped, tag = 'scoped memory for tpu_custom_call.1']
    #allocation9 [shape = 'u8[32768]{0}', space=vmem, size = 0x8000, scoped, tag = 'input window, operand 2, single buffered']
    #allocation10 [shape = 'u8[32768]{0}', space=vmem, size = 0x8000, scoped, tag = 'input window, operand 4, single buffered']
    #allocation11 [shape = 's32[1]{0}', space=sflag, size = 0x4, scoped, tag = 'scoped memory for tpu_custom_call.1']
    #allocation12 [shape = 'u8[32768]{0}', space=vmem, size = 0x8000, scoped, tag = 'input window, operand 5, single buffered']
    #allocation13 [shape = 'u8[32768]{0}', space=vmem, size = 0x8000, scoped, tag = 'input window, operand 7, single buffered']
    #allocation14 [shape = 's32[1]{0}', space=sflag, size = 0x4, scoped, tag = 'scoped memory for tpu_custom_call.1']
    #allocation15 [shape = 'u8[32768]{0}', space=vmem, size = 0x8000, scoped, tag = 'input window, operand 11, single buffered']
    #allocation16 [shape = 'u8[32768]{0}', space=vmem, size = 0x8000, scoped, tag = 'input window, operand 13, single buffered']
    #allocation17 [shape = 's32[1]{0}', space=sflag, size = 0x4, scoped, tag = 'scoped memory for tpu_custom_call.1']
    #allocation18 [shape = 'u8[8192]{0}', space=vmem, size = 0x2000, scoped, tag = 'output window, operand 0']
    %22 = vsyncpa [#allocation5], 0
    %s23 = scalar_lea.sflag [#allocation5], 1
    %24 = vsyncpa %s23, 0
    %25 = vsyncpa [#allocation8], 0
    %s26 = scalar_lea.sflag [#allocation8], 1
    %27 = vsyncpa %s26, 0
    %28 = vsyncpa [#allocation11], 0
    %29 = vsyncpa [#allocation14], 0
    %30 = vsyncpa [#allocation17], 0
    %31 = vsyncpa [#allocation6], 0
    %s32 = scalar_lea.sflag [#allocation6], 1
    %33 = vsyncpa %s32, 0
    loop: start=0, step=1, limit=4
    $region2: #{tpu_custom_call.1} parent=1 // loop_pre_header
      _
    $region3: #{tpu_custom_call.1} parent=1 // loop_header
      %s35 = sphi 0, %s39
      %p36 = scmp.ge.s32.totalorder %s35, 4
      %s42 = sphi 0, %s54
      %s43 = sphi 0, %s50
      %s44 = sphi 0, %s42
      %s45 = sphi 0, %s43
      %s46 = sphi 0, %s44
      %s47 = sphi 0, %s45
      %s57 = sphi 0, %s59
      %s60 = sphi 0, %s57
      %s61 = sphi 0, %s60
      %s77 = sphi 0, %s61
      %s85 = sphi 0, %s87
      %s88 = sphi 0, %s85
      %s89 = sphi 0, %s88
      %s105 = sphi 0, %s89
      %s109 = sphi 0, %s109
      %s111 = sphi 0, %s109
      %s112 = sphi 0, %s111
      %s126 = sphi 0, %s112
      %s130 = sphi 0, %s130
      %s132 = sphi 0, %s130
      %s133 = sphi 0, %s132
      %s147 = sphi 0, %s133
      %s151 = sphi 0, %s151
      %s153 = sphi 0, %s151
      %s154 = sphi 0, %s153
      %s168 = sphi 0, %s154
      %s172 = sphi 0, %s172
      %s174 = sphi 0, %s172
      %s175 = sphi 0, %s174
      %s189 = sphi 0, %s175
      %s193 = sphi 0, %s193
      %s195 = sphi 0, %s193
      %s196 = sphi 0, %s195
      %s210 = sphi 0, %s196
      %s214 = sphi 0, %s214
      %s216 = sphi 0, %s214
      %s217 = sphi 0, %s216
      %s231 = sphi 0, %s217
      %s235 = sphi 0, %s235
      %s237 = sphi 0, %s235
      %s238 = sphi 0, %s237
      %s252 = sphi 0, %s238
      %s256 = sphi 0, %s256
      %s258 = sphi 0, %s256
      %s259 = sphi 0, %s258
      %s273 = sphi 0, %s259
      %s277 = sphi 0, %s277
      %s279 = sphi 0, %s277
      %s280 = sphi 0, %s279
      %s294 = sphi 0, %s280
      %s298 = sphi 0, %s298
      %s300 = sphi 0, %s298
      %s301 = sphi 0, %s300
      %s315 = sphi 0, %s301
      %s319 = sphi 0, %s319
      %s321 = sphi 0, %s319
      %s322 = sphi 0, %s321
      %s336 = sphi 0, %s322
      %s340 = sphi 0, %s340
      %s342 = sphi 0, %s340
      %s343 = sphi 0, %s342
      %s357 = sphi 0, %s343
      %s361 = sphi 0, %s361
      %s363 = sphi 0, %s361
      %s364 = sphi 0, %s363
      %s378 = sphi 0, %s364
      %s382 = sphi 0, %s382
      %s384 = sphi 0, %s382
      %s385 = sphi 0, %s384
      %s399 = sphi 0, %s385
      %s403 = sphi 0, %s403
      %s405 = sphi 0, %s403
      %s406 = sphi 0, %s405
      %s420 = sphi 0, %s406
      %s428 = sphi 0, %s430
      %s431 = sphi 0, %s428
      %s432 = sphi 0, %s431
      %s448 = sphi 0, %s432
    $region4: #{tpu_custom_call.1} parent=1 // loop_header_branch
      %38 = sbr.rel (%p36) target = $region8
    $region5: #{tpu_custom_call.1} parent=1 // loop_body
      %s40 = ssub.s32 %s35, 1
      %s41 = ssub.s32 %s35, 2
      %s48 = sadd.s32 1, %s43
      %p49 = scmp.ge.s32.totalorder %s48, 1
      %s50 = scalar_select %p49, 0, %s48
      %s51 = sadd.s32 1, %s42
      %s52 = scalar_select %p49, %s51, %s42
      %p53 = scmp.ge.s32.totalorder %s52, 2
      %s54 = scalar_select %p53, 0, %s52
      %s55 = ssub.s32 %s42, %s54
      %p56 = scmp.eq.s32.totalorder %s55, 0
      %s58 = sadd.s32 %s57, 1
      %s59 = scalar_select %p56, %s57, %s58
      %p62 = pneg %p56
      %p63 = scmp.eq.s32.totalorder %s35, 1
      %p64 = por %p62, %p63
      %p65 = scmp.ne.s32.totalorder %s57, %s60
      %p66 = scmp.eq.s32.totalorder %s35, 0
      %p67 = por %p65, %p66
      %p68 = scmp.ne.s32.totalorder %s57, %s60
      %p69 = scmp.eq.s32.totalorder %s40, 1
      %p70 = por %p68, %p69
      %p71 = scmp.ne.s32.totalorder %s60, %s61
      %p72 = scmp.eq.s32.totalorder %s40, 0
      %p73 = por %p71, %p72
      %p74 = scmp.ne.s32.totalorder %s60, %s61
      %p75 = scmp.eq.s32.totalorder %s41, 1
      %p76 = por %p74, %p75
      %p78 = scmp.ne.s32.totalorder %s61, %s77
      %p79 = scmp.eq.s32.totalorder %s41, 0
      %p80 = por %p78, %p79
      %s81 = ssub.s32 %s42, %s54
      %s82 = ssub.s32 %s43, %s50
      %s83 = sor.u32 %s81, %s82
      %p84 = scmp.eq.s32.totalorder %s83, 0
      %s86 = sadd.s32 %s85, 1
      %s87 = scalar_select %p84, %s85, %s86
      %p90 = pneg %p84
      %p91 = scmp.eq.s32.totalorder %s35, 1
      %p92 = por %p90, %p91
      %p93 = scmp.ne.s32.totalorder %s85, %s88
      %p94 = scmp.eq.s32.totalorder %s35, 0
      %p95 = por %p93, %p94
      %p96 = scmp.ne.s32.totalorder %s85, %s88
      %p97 = scmp.eq.s32.totalorder %s40, 1
      %p98 = por %p96, %p97
      %p99 = scmp.ne.s32.totalorder %s88, %s89
      %p100 = scmp.eq.s32.totalorder %s40, 0
      %p101 = por %p99, %p100
      %p102 = scmp.ne.s32.totalorder %s88, %s89
      %p103 = scmp.eq.s32.totalorder %s41, 1
      %p104 = por %p102, %p103
      %p106 = scmp.ne.s32.totalorder %s89, %s105
      %p107 = scmp.eq.s32.totalorder %s41, 0
      %p108 = por %p106, %p107
      %s110 = sadd.s32 %s109, 1
      %p113 = scmp.eq.s32.totalorder %s35, 1
      %p114 = scmp.ne.s32.totalorder %s109, %s111
      %p115 = scmp.eq.s32.totalorder %s35, 0
      %p116 = por %p114, %p115
      %p117 = scmp.ne.s32.totalorder %s109, %s111
      %p118 = scmp.eq.s32.totalorder %s40, 1
      %p119 = por %p117, %p118
      %p120 = scmp.ne.s32.totalorder %s111, %s112
      %p121 = scmp.eq.s32.totalorder %s40, 0
      %p122 = por %p120, %p121
      %p123 = scmp.ne.s32.totalorder %s111, %s112
      %p124 = scmp.eq.s32.totalorder %s41, 1
      %p125 = por %p123, %p124
      %p127 = scmp.ne.s32.totalorder %s112, %s126
      %p128 = scmp.eq.s32.totalorder %s41, 0
      %p129 = por %p127, %p128
      %s131 = sadd.s32 %s130, 1
      %p134 = scmp.eq.s32.totalorder %s35, 1
      %p135 = scmp.ne.s32.totalorder %s130, %s132
      %p136 = scmp.eq.s32.totalorder %s35, 0
      %p137 = por %p135, %p136
      %p138 = scmp.ne.s32.totalorder %s130, %s132
      %p139 = scmp.eq.s32.totalorder %s40, 1
      %p140 = por %p138, %p139
      %p141 = scmp.ne.s32.totalorder %s132, %s133
      %p142 = scmp.eq.s32.totalorder %s40, 0
      %p143 = por %p141, %p142
      %p144 = scmp.ne.s32.totalorder %s132, %s133
      %p145 = scmp.eq.s32.totalorder %s41, 1
      %p146 = por %p144, %p145
      %p148 = scmp.ne.s32.totalorder %s133, %s147
      %p149 = scmp.eq.s32.totalorder %s41, 0
      %p150 = por %p148, %p149
      %s152 = sadd.s32 %s151, 1
      %p155 = scmp.eq.s32.totalorder %s35, 1
      %p156 = scmp.ne.s32.totalorder %s151, %s153
      %p157 = scmp.eq.s32.totalorder %s35, 0
      %p158 = por %p156, %p157
      %p159 = scmp.ne.s32.totalorder %s151, %s153
      %p160 = scmp.eq.s32.totalorder %s40, 1
      %p161 = por %p159, %p160
      %p162 = scmp.ne.s32.totalorder %s153, %s154
      %p163 = scmp.eq.s32.totalorder %s40, 0
      %p164 = por %p162, %p163
      %p165 = scmp.ne.s32.totalorder %s153, %s154
      %p166 = scmp.eq.s32.totalorder %s41, 1
      %p167 = por %p165, %p166
      %p169 = scmp.ne.s32.totalorder %s154, %s168
      %p170 = scmp.eq.s32.totalorder %s41, 0
      %p171 = por %p169, %p170
      %s173 = sadd.s32 %s172, 1
      %p176 = scmp.eq.s32.totalorder %s35, 1
      %p177 = scmp.ne.s32.totalorder %s172, %s174
      %p178 = scmp.eq.s32.totalorder %s35, 0
      %p179 = por %p177, %p178
      %p180 = scmp.ne.s32.totalorder %s172, %s174
      %p181 = scmp.eq.s32.totalorder %s40, 1
      %p182 = por %p180, %p181
      %p183 = scmp.ne.s32.totalorder %s174, %s175
      %p184 = scmp.eq.s32.totalorder %s40, 0
      %p185 = por %p183, %p184
      %p186 = scmp.ne.s32.totalorder %s174, %s175
      %p187 = scmp.eq.s32.totalorder %s41, 1
      %p188 = por %p186, %p187
      %p190 = scmp.ne.s32.totalorder %s175, %s189
      %p191 = scmp.eq.s32.totalorder %s41, 0
      %p192 = por %p190, %p191
      %s194 = sadd.s32 %s193, 1
      %p197 = scmp.eq.s32.totalorder %s35, 1
      %p198 = scmp.ne.s32.totalorder %s193, %s195
      %p199 = scmp.eq.s32.totalorder %s35, 0
      %p200 = por %p198, %p199
      %p201 = scmp.ne.s32.totalorder %s193, %s195
      %p202 = scmp.eq.s32.totalorder %s40, 1
      %p203 = por %p201, %p202
      %p204 = scmp.ne.s32.totalorder %s195, %s196
      %p205 = scmp.eq.s32.totalorder %s40, 0
      %p206 = por %p204, %p205
      %p207 = scmp.ne.s32.totalorder %s195, %s196
      %p208 = scmp.eq.s32.totalorder %s41, 1
      %p209 = por %p207, %p208
      %p211 = scmp.ne.s32.totalorder %s196, %s210
      %p212 = scmp.eq.s32.totalorder %s41, 0
      %p213 = por %p211, %p212
      %s215 = sadd.s32 %s214, 1
      %p218 = scmp.eq.s32.totalorder %s35, 1
      %p219 = scmp.ne.s32.totalorder %s214, %s216
      %p220 = scmp.eq.s32.totalorder %s35, 0
      %p221 = por %p219, %p220
      %p222 = scmp.ne.s32.totalorder %s214, %s216
      %p223 = scmp.eq.s32.totalorder %s40, 1
      %p224 = por %p222, %p223
      %p225 = scmp.ne.s32.totalorder %s216, %s217
      %p226 = scmp.eq.s32.totalorder %s40, 0
      %p227 = por %p225, %p226
      %p228 = scmp.ne.s32.totalorder %s216, %s217
      %p229 = scmp.eq.s32.totalorder %s41, 1
      %p230 = por %p228, %p229
      %p232 = scmp.ne.s32.totalorder %s217, %s231
      %p233 = scmp.eq.s32.totalorder %s41, 0
      %p234 = por %p232, %p233
      %s236 = sadd.s32 %s235, 1
      %p239 = scmp.eq.s32.totalorder %s35, 1
      %p240 = scmp.ne.s32.totalorder %s235, %s237
      %p241 = scmp.eq.s32.totalorder %s35, 0
      %p242 = por %p240, %p241
      %p243 = scmp.ne.s32.totalorder %s235, %s237
      %p244 = scmp.eq.s32.totalorder %s40, 1
      %p245 = por %p243, %p244
      %p246 = scmp.ne.s32.totalorder %s237, %s238
      %p247 = scmp.eq.s32.totalorder %s40, 0
      %p248 = por %p246, %p247
      %p249 = scmp.ne.s32.totalorder %s237, %s238
      %p250 = scmp.eq.s32.totalorder %s41, 1
      %p251 = por %p249, %p250
      %p253 = scmp.ne.s32.totalorder %s238, %s252
      %p254 = scmp.eq.s32.totalorder %s41, 0
      %p255 = por %p253, %p254
      %s257 = sadd.s32 %s256, 1
      %p260 = scmp.eq.s32.totalorder %s35, 1
      %p261 = scmp.ne.s32.totalorder %s256, %s258
      %p262 = scmp.eq.s32.totalorder %s35, 0
      %p263 = por %p261, %p262
      %p264 = scmp.ne.s32.totalorder %s256, %s258
      %p265 = scmp.eq.s32.totalorder %s40, 1
      %p266 = por %p264, %p265
      %p267 = scmp.ne.s32.totalorder %s258, %s259
      %p268 = scmp.eq.s32.totalorder %s40, 0
      %p269 = por %p267, %p268
      %p270 = scmp.ne.s32.totalorder %s258, %s259
      %p271 = scmp.eq.s32.totalorder %s41, 1
      %p272 = por %p270, %p271
      %p274 = scmp.ne.s32.totalorder %s259, %s273
      %p275 = scmp.eq.s32.totalorder %s41, 0
      %p276 = por %p274, %p275
      %s278 = sadd.s32 %s277, 1
      %p281 = scmp.eq.s32.totalorder %s35, 1
      %p282 = scmp.ne.s32.totalorder %s277, %s279
      %p283 = scmp.eq.s32.totalorder %s35, 0
      %p284 = por %p282, %p283
      %p285 = scmp.ne.s32.totalorder %s277, %s279
      %p286 = scmp.eq.s32.totalorder %s40, 1
      %p287 = por %p285, %p286
      %p288 = scmp.ne.s32.totalorder %s279, %s280
      %p289 = scmp.eq.s32.totalorder %s40, 0
      %p290 = por %p288, %p289
      %p291 = scmp.ne.s32.totalorder %s279, %s280
      %p292 = scmp.eq.s32.totalorder %s41, 1
      %p293 = por %p291, %p292
      %p295 = scmp.ne.s32.totalorder %s280, %s294
      %p296 = scmp.eq.s32.totalorder %s41, 0
      %p297 = por %p295, %p296
      %s299 = sadd.s32 %s298, 1
      %p302 = scmp.eq.s32.totalorder %s35, 1
      %p303 = scmp.ne.s32.totalorder %s298, %s300
      %p304 = scmp.eq.s32.totalorder %s35, 0
      %p305 = por %p303, %p304
      %p306 = scmp.ne.s32.totalorder %s298, %s300
      %p307 = scmp.eq.s32.totalorder %s40, 1
      %p308 = por %p306, %p307
      %p309 = scmp.ne.s32.totalorder %s300, %s301
      %p310 = scmp.eq.s32.totalorder %s40, 0
      %p311 = por %p309, %p310
      %p312 = scmp.ne.s32.totalorder %s300, %s301
      %p313 = scmp.eq.s32.totalorder %s41, 1
      %p314 = por %p312, %p313
      %p316 = scmp.ne.s32.totalorder %s301, %s315
      %p317 = scmp.eq.s32.totalorder %s41, 0
      %p318 = por %p316, %p317
      %s320 = sadd.s32 %s319, 1
      %p323 = scmp.eq.s32.totalorder %s35, 1
      %p324 = scmp.ne.s32.totalorder %s319, %s321
      %p325 = scmp.eq.s32.totalorder %s35, 0
      %p326 = por %p324, %p325
      %p327 = scmp.ne.s32.totalorder %s319, %s321
      %p328 = scmp.eq.s32.totalorder %s40, 1
      %p329 = por %p327, %p328
      %p330 = scmp.ne.s32.totalorder %s321, %s322
      %p331 = scmp.eq.s32.totalorder %s40, 0
      %p332 = por %p330, %p331
      %p333 = scmp.ne.s32.totalorder %s321, %s322
      %p334 = scmp.eq.s32.totalorder %s41, 1
      %p335 = por %p333, %p334
      %p337 = scmp.ne.s32.totalorder %s322, %s336
      %p338 = scmp.eq.s32.totalorder %s41, 0
      %p339 = por %p337, %p338
      %s341 = sadd.s32 %s340, 1
      %p344 = scmp.eq.s32.totalorder %s35, 1
      %p345 = scmp.ne.s32.totalorder %s340, %s342
      %p346 = scmp.eq.s32.totalorder %s35, 0
      %p347 = por %p345, %p346
      %p348 = scmp.ne.s32.totalorder %s340, %s342
      %p349 = scmp.eq.s32.totalorder %s40, 1
      %p350 = por %p348, %p349
      %p351 = scmp.ne.s32.totalorder %s342, %s343
      %p352 = scmp.eq.s32.totalorder %s40, 0
      %p353 = por %p351, %p352
      %p354 = scmp.ne.s32.totalorder %s342, %s343
      %p355 = scmp.eq.s32.totalorder %s41, 1
      %p356 = por %p354, %p355
      %p358 = scmp.ne.s32.totalorder %s343, %s357
      %p359 = scmp.eq.s32.totalorder %s41, 0
      %p360 = por %p358, %p359
      %s362 = sadd.s32 %s361, 1
      %p365 = scmp.eq.s32.totalorder %s35, 1
      %p366 = scmp.ne.s32.totalorder %s361, %s363
      %p367 = scmp.eq.s32.totalorder %s35, 0
      %p368 = por %p366, %p367
      %p369 = scmp.ne.s32.totalorder %s361, %s363
      %p370 = scmp.eq.s32.totalorder %s40, 1
      %p371 = por %p369, %p370
      %p372 = scmp.ne.s32.totalorder %s363, %s364
      %p373 = scmp.eq.s32.totalorder %s40, 0
      %p374 = por %p372, %p373
      %p375 = scmp.ne.s32.totalorder %s363, %s364
      %p376 = scmp.eq.s32.totalorder %s41, 1
      %p377 = por %p375, %p376
      %p379 = scmp.ne.s32.totalorder %s364, %s378
      %p380 = scmp.eq.s32.totalorder %s41, 0
      %p381 = por %p379, %p380
      %s383 = sadd.s32 %s382, 1
      %p386 = scmp.eq.s32.totalorder %s35, 1
      %p387 = scmp.ne.s32.totalorder %s382, %s384
      %p388 = scmp.eq.s32.totalorder %s35, 0
      %p389 = por %p387, %p388
      %p390 = scmp.ne.s32.totalorder %s382, %s384
      %p391 = scmp.eq.s32.totalorder %s40, 1
      %p392 = por %p390, %p391
      %p393 = scmp.ne.s32.totalorder %s384, %s385
      %p394 = scmp.eq.s32.totalorder %s40, 0
      %p395 = por %p393, %p394
      %p396 = scmp.ne.s32.totalorder %s384, %s385
      %p397 = scmp.eq.s32.totalorder %s41, 1
      %p398 = por %p396, %p397
      %p400 = scmp.ne.s32.totalorder %s385, %s399
      %p401 = scmp.eq.s32.totalorder %s41, 0
      %p402 = por %p400, %p401
      %s404 = sadd.s32 %s403, 1
      %p407 = scmp.eq.s32.totalorder %s35, 1
      %p408 = scmp.ne.s32.totalorder %s403, %s405
      %p409 = scmp.eq.s32.totalorder %s35, 0
      %p410 = por %p408, %p409
      %p411 = scmp.ne.s32.totalorder %s403, %s405
      %p412 = scmp.eq.s32.totalorder %s40, 1
      %p413 = por %p411, %p412
      %p414 = scmp.ne.s32.totalorder %s405, %s406
      %p415 = scmp.eq.s32.totalorder %s40, 0
      %p416 = por %p414, %p415
      %p417 = scmp.ne.s32.totalorder %s405, %s406
      %p418 = scmp.eq.s32.totalorder %s41, 1
      %p419 = por %p417, %p418
      %p421 = scmp.ne.s32.totalorder %s406, %s420
      %p422 = scmp.eq.s32.totalorder %s41, 0
      %p423 = por %p421, %p422
      %s424 = ssub.s32 %s42, %s54
      %s425 = ssub.s32 %s43, %s50
      %s426 = sor.u32 %s424, %s425
      %p427 = scmp.eq.s32.totalorder %s426, 0
      %s429 = sadd.s32 %s428, 1
      %s430 = scalar_select %p427, %s428, %s429
      %p433 = pneg %p427
      %p434 = scmp.eq.s32.totalorder %s35, 1
      %p435 = por %p433, %p434
      %p436 = scmp.ne.s32.totalorder %s428, %s431
      %p437 = scmp.eq.s32.totalorder %s35, 0
      %p438 = por %p436, %p437
      %p439 = scmp.ne.s32.totalorder %s428, %s431
      %p440 = scmp.eq.s32.totalorder %s40, 1
      %p441 = por %p439, %p440
      %p442 = scmp.ne.s32.totalorder %s431, %s432
      %p443 = scmp.eq.s32.totalorder %s40, 0
      %p444 = por %p442, %p443
      %p445 = scmp.ne.s32.totalorder %s431, %s432
      %p446 = scmp.eq.s32.totalorder %s41, 1
      %p447 = por %p445, %p446
      %p449 = scmp.ne.s32.totalorder %s432, %s448
      %p450 = scmp.eq.s32.totalorder %s41, 0
      %p451 = por %p449, %p450
      %p452 = scmp.le.s32.totalorder 1, %s35
      %p453 = scmp.lt.s32.totalorder %s35, 3
      %p454 = pnand %p452, %p453
      %p455 = pneg %p454
      // Predicated region
      $region9: #{tpu_custom_call.1} parent=5 // pred_check
        _
      $region10: #{tpu_custom_call.1} parent=5 // pred_check_branch
        %457 = sbr.rel (%p454) target = $region12
      $region11: #{tpu_custom_call.1} parent=5 // pred_region
        %s458 = ssub.s32 %s35, 1
        // Predicated region
        $region13: #{tpu_custom_call.1} parent=11 // pred_check
          %p459 = pneg %p122
        $region14: #{tpu_custom_call.1} parent=11 // pred_check_branch
          %461 = sbr.rel (%p459) target = $region16
        $region15: #{tpu_custom_call.1} parent=11 // pred_region
          %s463 = ssub.s32 1024, 1024
          %464 = vsyncadd [#allocation8], %s463
          %s465 = sshll.u32 [#allocation9], 4
          %s466 = int_to_ptr.vmem [resolvable:$true] %s465
          %471 = dma.hbm_to_vmem [thread:$0]  %s2, 1024, %s466, [#allocation8], 64, 64, 4
        $region16: #{tpu_custom_call.1} parent=11 // pred_fallthru
          _
        // Predicated region
        $region17: #{tpu_custom_call.1} parent=11 // pred_check
          %p472 = pneg %p143
        $region18: #{tpu_custom_call.1} parent=11 // pred_check_branch
          %474 = sbr.rel (%p472) target = $region20
        $region19: #{tpu_custom_call.1} parent=11 // pred_region
          _
        $region20: #{tpu_custom_call.1} parent=11 // pred_fallthru
          _
        // Predicated region
        $region21: #{tpu_custom_call.1} parent=11 // pred_check
          %p475 = pneg %p164
        $region22: #{tpu_custom_call.1} parent=11 // pred_check_branch
          %477 = sbr.rel (%p475) target = $region24
        $region23: #{tpu_custom_call.1} parent=11 // pred_region
          %s479 = ssub.s32 1024, 1024
          %480 = vsyncadd [#allocation11], %s479
          %s481 = sshll.u32 [#allocation10], 4
          %s482 = int_to_ptr.vmem [resolvable:$true] %s481
          %487 = dma.hbm_to_vmem [thread:$0]  %s4, 1024, %s482, [#allocation11], 64, 64, 4
        $region24: #{tpu_custom_call.1} parent=11 // pred_fallthru
          _
        // Predicated region
        $region25: #{tpu_custom_call.1} parent=11 // pred_check
          %p488 = pneg %p185
        $region26: #{tpu_custom_call.1} parent=11 // pred_check_branch
          %490 = sbr.rel (%p488) target = $region28
        $region27: #{tpu_custom_call.1} parent=11 // pred_region
          %s492 = ssub.s32 1024, 1024
          %493 = vsyncadd [#allocation11], %s492
          %s494 = sshll.u32 [#allocation12], 4
          %s495 = int_to_ptr.vmem [resolvable:$true] %s494
          %500 = dma.hbm_to_vmem [thread:$0]  %s5, 1024, %s495, [#allocation11], 64, 64, 4
        $region28: #{tpu_custom_call.1} parent=11 // pred_fallthru
          _
        // Predicated region
        $region29: #{tpu_custom_call.1} parent=11 // pred_check
          %p501 = pneg %p206
        $region30: #{tpu_custom_call.1} parent=11 // pred_check_branch
          %503 = sbr.rel (%p501) target = $region32
        $region31: #{tpu_custom_call.1} parent=11 // pred_region
          _
        $region32: #{tpu_custom_call.1} parent=11 // pred_fallthru
          _
        // Predicated region
        $region33: #{tpu_custom_call.1} parent=11 // pred_check
          %p504 = pneg %p227
        $region34: #{tpu_custom_call.1} parent=11 // pred_check_branch
          %506 = sbr.rel (%p504) target = $region36
        $region35: #{tpu_custom_call.1} parent=11 // pred_region
          %s508 = ssub.s32 1024, 1024
          %509 = vsyncadd [#allocation14], %s508
          %s510 = sshll.u32 [#allocation13], 4
          %s511 = int_to_ptr.vmem [resolvable:$true] %s510
          %516 = dma.hbm_to_vmem [thread:$0]  %s7, 1024, %s511, [#allocation14], 64, 64, 4
        $region36: #{tpu_custom_call.1} parent=11 // pred_fallthru
          _
        // Predicated region
        $region37: #{tpu_custom_call.1} parent=11 // pred_check
          %p517 = pneg %p248
        $region38: #{tpu_custom_call.1} parent=11 // pred_check_branch
          %519 = sbr.rel (%p517) target = $region40
        $region39: #{tpu_custom_call.1} parent=11 // pred_region
          _
        $region40: #{tpu_custom_call.1} parent=11 // pred_fallthru
          _
        // Predicated region
        $region41: #{tpu_custom_call.1} parent=11 // pred_check
          %p520 = pneg %p269
        $region42: #{tpu_custom_call.1} parent=11 // pred_check_branch
          %522 = sbr.rel (%p520) target = $region44
        $region43: #{tpu_custom_call.1} parent=11 // pred_region
          _
        $region44: #{tpu_custom_call.1} parent=11 // pred_fallthru
          _
        // Predicated region
        $region45: #{tpu_custom_call.1} parent=11 // pred_check
          %p523 = pneg %p290
        $region46: #{tpu_custom_call.1} parent=11 // pred_check_branch
          %525 = sbr.rel (%p523) target = $region48
        $region47: #{tpu_custom_call.1} parent=11 // pred_region
          _
        $region48: #{tpu_custom_call.1} parent=11 // pred_fallthru
          _
        // Predicated region
        $region49: #{tpu_custom_call.1} parent=11 // pred_check
          %p526 = pneg %p311
        $region50: #{tpu_custom_call.1} parent=11 // pred_check_branch
          %528 = sbr.rel (%p526) target = $region52
        $region51: #{tpu_custom_call.1} parent=11 // pred_region
          %s530 = ssub.s32 1024, 1024
          %531 = vsyncadd [#allocation14], %s530
          %s532 = sshll.u32 [#allocation15], 4
          %s533 = int_to_ptr.vmem [resolvable:$true] %s532
          %538 = dma.hbm_to_vmem [thread:$0]  %s11, 1024, %s533, [#allocation14], 64, 64, 4
        $region52: #{tpu_custom_call.1} parent=11 // pred_fallthru
          _
        // Predicated region
        $region53: #{tpu_custom_call.1} parent=11 // pred_check
          %p539 = pneg %p332
        $region54: #{tpu_custom_call.1} parent=11 // pred_check_branch
          %541 = sbr.rel (%p539) target = $region56
        $region55: #{tpu_custom_call.1} parent=11 // pred_region
          _
        $region56: #{tpu_custom_call.1} parent=11 // pred_fallthru
          _
        // Predicated region
        $region57: #{tpu_custom_call.1} parent=11 // pred_check
          %p542 = pneg %p353
        $region58: #{tpu_custom_call.1} parent=11 // pred_check_branch
          %544 = sbr.rel (%p542) target = $region60
        $region59: #{tpu_custom_call.1} parent=11 // pred_region
          %s546 = ssub.s32 1024, 1024
          %547 = vsyncadd [#allocation17], %s546
          %s548 = sshll.u32 [#allocation16], 4
          %s549 = int_to_ptr.vmem [resolvable:$true] %s548
          %554 = dma.hbm_to_vmem [thread:$0]  %s13, 1024, %s549, [#allocation17], 64, 64, 4
        $region60: #{tpu_custom_call.1} parent=11 // pred_fallthru
          _
        // Predicated region
        $region61: #{tpu_custom_call.1} parent=11 // pred_check
          %p555 = pneg %p374
        $region62: #{tpu_custom_call.1} parent=11 // pred_check_branch
          %557 = sbr.rel (%p555) target = $region64
        $region63: #{tpu_custom_call.1} parent=11 // pred_region
          _
        $region64: #{tpu_custom_call.1} parent=11 // pred_fallthru
          _
        // Predicated region
        $region65: #{tpu_custom_call.1} parent=11 // pred_check
          %p558 = pneg %p395
        $region66: #{tpu_custom_call.1} parent=11 // pred_check_branch
          %560 = sbr.rel (%p558) target = $region68
        $region67: #{tpu_custom_call.1} parent=11 // pred_region
          _
        $region68: #{tpu_custom_call.1} parent=11 // pred_fallthru
          _
        // Predicated region
        $region69: #{tpu_custom_call.1} parent=11 // pred_check
          %p561 = pneg %p416
        $region70: #{tpu_custom_call.1} parent=11 // pred_check_branch
          %563 = sbr.rel (%p561) target = $region72
        $region71: #{tpu_custom_call.1} parent=11 // pred_region
          _
        $region72: #{tpu_custom_call.1} parent=11 // pred_fallthru
          _
      $region12: #{tpu_custom_call.1} parent=5 // pred_fallthru
        _
      %p564 = scmp.lt.s32.totalorder %s35, 2
      // Predicated region
      $region73: #{tpu_custom_call.1} parent=5 // pred_check
        %p565 = pneg %p564
      $region74: #{tpu_custom_call.1} parent=5 // pred_check_branch
        %567 = sbr.rel (%p565) target = $region76
      $region75: #{tpu_custom_call.1} parent=5 // pred_region
        // Predicated region
        $region77: #{tpu_custom_call.1} parent=75 // pred_check
          %p568 = pneg %p67
        $region78: #{tpu_custom_call.1} parent=75 // pred_check_branch
          %570 = sbr.rel (%p568) target = $region80
        $region79: #{tpu_custom_call.1} parent=75 // pred_region
          %s571 = sand.u32 %s57, 1
          %s572 = scalar_lea.sflag [#allocation5], %s571
          %s573 = sand.u32 %s57, 1
          %s574 = smul.addr %s573, 16
          %s575 = scalar_lea.vmem [#allocation4], %s574
          %s577 = ssub.s32 256, 256
          %578 = vsyncadd %s572, %s577
          %s579 = smul.addr %s42, 2
          %s580 = smul.addr %s579, 128
          %s581 = scalar_lea.hbm %s0, %s580
          %s582 = sshll.u32 %s575, 4
          %s583 = int_to_ptr.vmem [resolvable:$true] %s582
          %588 = dma.hbm_to_vmem [thread:$0]  %s581, 256, %s583, %s572, 128, 128, 8
        $region80: #{tpu_custom_call.1} parent=75 // pred_fallthru
          _
        // Predicated region
        $region81: #{tpu_custom_call.1} parent=75 // pred_check
          %p589 = pneg %p95
        $region82: #{tpu_custom_call.1} parent=75 // pred_check_branch
          %591 = sbr.rel (%p589) target = $region84
        $region83: #{tpu_custom_call.1} parent=75 // pred_region
          %s592 = sand.u32 %s35, 1
          %s593 = scalar_lea.sflag [#allocation8], %s592
          %s594 = sand.u32 %s85, 1
          %s595 = smul.addr %s594, 8
          %s596 = scalar_lea.vmem [#allocation7], %s595
          %s598 = ssub.s32 128, 128
          %599 = vsyncadd %s593, %s598
          %s600 = sadd.s32 %s43, %s42
          %s601 = smul.addr %s600, 128
          %s602 = scalar_lea.hbm %s1, %s601
          %s604 = sshll.u32 %s596, 4
          %s605 = int_to_ptr.vmem [resolvable:$true] %s604
          %607 = dma.hbm_to_vmem [thread:$0]  %s602, 128, %s605, %s593
        $region84: #{tpu_custom_call.1} parent=75 // pred_fallthru
          _
      $region76: #{tpu_custom_call.1} parent=5 // pred_fallthru
        _
      %p608 = scmp.le.s32.totalorder 1, %s35
      %p609 = scmp.lt.s32.totalorder %s35, 3
      %p610 = pnand %p608, %p609
      %p611 = pneg %p610
      // Predicated region
      $region85: #{tpu_custom_call.1} parent=5 // pred_check
        _
      $region86: #{tpu_custom_call.1} parent=5 // pred_check_branch
        %613 = sbr.rel (%p610) target = $region88
      $region87: #{tpu_custom_call.1} parent=5 // pred_region
        %s614 = ssub.s32 %s35, 1
        %s615 = sand.u32 %s60, 1
        %s616 = scalar_lea.sflag [#allocation5], %s615
        %s617 = sand.u32 %s60, 1
        %s618 = smul.addr %s617, 16
        %s619 = scalar_lea.vmem [#allocation4], %s618
        // Predicated region
        $region89: #{tpu_custom_call.1} parent=87 // pred_check
          %p620 = pneg %p73
        $region90: #{tpu_custom_call.1} parent=87 // pred_check_branch
          %622 = sbr.rel (%p620) target = $region92
        $region91: #{tpu_custom_call.1} parent=87 // pred_region
          %623 = dma.done %s616, 256
        $region92: #{tpu_custom_call.1} parent=87 // pred_fallthru
          _
        %s624 = sand.u32 %s40, 1
        %s625 = scalar_lea.sflag [#allocation8], %s624
        %s626 = sand.u32 %s88, 1
        %s627 = smul.addr %s626, 8
        %s628 = scalar_lea.vmem [#allocation7], %s627
        // Predicated region
        $region93: #{tpu_custom_call.1} parent=87 // pred_check
          %p629 = pneg %p101
        $region94: #{tpu_custom_call.1} parent=87 // pred_check_branch
          %631 = sbr.rel (%p629) target = $region96
        $region95: #{tpu_custom_call.1} parent=87 // pred_region
          %632 = dma.done %s625, 128
        $region96: #{tpu_custom_call.1} parent=87 // pred_fallthru
          _
        // Predicated region
        $region97: #{tpu_custom_call.1} parent=87 // pred_check
          %p633 = pneg %p122
        $region98: #{tpu_custom_call.1} parent=87 // pred_check_branch
          %635 = sbr.rel (%p633) target = $region100
        $region99: #{tpu_custom_call.1} parent=87 // pred_region
          %636 = dma.done [#allocation8], 1024
        $region100: #{tpu_custom_call.1} parent=87 // pred_fallthru
          _
        // Predicated region
        $region101: #{tpu_custom_call.1} parent=87 // pred_check
          %p637 = pneg %p164
        $region102: #{tpu_custom_call.1} parent=87 // pred_check_branch
          %639 = sbr.rel (%p637) target = $region104
        $region103: #{tpu_custom_call.1} parent=87 // pred_region
          %640 = dma.done [#allocation11], 1024
        $region104: #{tpu_custom_call.1} parent=87 // pred_fallthru
          _
        // Predicated region
        $region105: #{tpu_custom_call.1} parent=87 // pred_check
          %p641 = pneg %p185
        $region106: #{tpu_custom_call.1} parent=87 // pred_check_branch
          %643 = sbr.rel (%p641) target = $region108
        $region107: #{tpu_custom_call.1} parent=87 // pred_region
          %644 = dma.done [#allocation11], 1024
        $region108: #{tpu_custom_call.1} parent=87 // pred_fallthru
          _
        // Predicated region
        $region109: #{tpu_custom_call.1} parent=87 // pred_check
          %p645 = pneg %p227
        $region110: #{tpu_custom_call.1} parent=87 // pred_check_branch
          %647 = sbr.rel (%p645) target = $region112
        $region111: #{tpu_custom_call.1} parent=87 // pred_region
          %648 = dma.done [#allocation14], 1024
        $region112: #{tpu_custom_call.1} parent=87 // pred_fallthru
          _
        // Predicated region
        $region113: #{tpu_custom_call.1} parent=87 // pred_check
          %p649 = pneg %p311
        $region114: #{tpu_custom_call.1} parent=87 // pred_check_branch
          %651 = sbr.rel (%p649) target = $region116
        $region115: #{tpu_custom_call.1} parent=87 // pred_region
          %652 = dma.done [#allocation14], 1024
        $region116: #{tpu_custom_call.1} parent=87 // pred_fallthru
          _
        // Predicated region
        $region117: #{tpu_custom_call.1} parent=87 // pred_check
          %p653 = pneg %p353
        $region118: #{tpu_custom_call.1} parent=87 // pred_check_branch
          %655 = sbr.rel (%p653) target = $region120
        $region119: #{tpu_custom_call.1} parent=87 // pred_region
          %656 = dma.done [#allocation17], 1024
        $region120: #{tpu_custom_call.1} parent=87 // pred_fallthru
          _
        %s657 = sand.u32 %s60, 1
        %s658 = scalar_lea.sflag [#allocation5], %s657
        %s659 = sand.u32 %s60, 1
        %s660 = smul.addr %s659, 16
        %s661 = scalar_lea.vmem [#allocation4], %s660
        %p662 = pneg %p73
        %p663 = pneg %p70
        %s664 = sand.u32 %s40, 1
        %s665 = scalar_lea.sflag [#allocation8], %s664
        %s666 = sand.u32 %s88, 1
        %s667 = smul.addr %s666, 8
        %s668 = scalar_lea.vmem [#allocation7], %s667
        %p669 = pneg %p101
        %p670 = pneg %p98
        %p671 = pneg %p122
        %p672 = pneg %p119
        %p673 = pneg %p143
        %p674 = pneg %p140
        %p675 = pneg %p164
        %p676 = pneg %p161
        %p677 = pneg %p185
        %p678 = pneg %p182
        %p679 = pneg %p206
        %p680 = pneg %p203
        %p681 = pneg %p227
        %p682 = pneg %p224
        %p683 = pneg %p248
        %p684 = pneg %p245
        %p685 = pneg %p269
        %p686 = pneg %p266
        %p687 = pneg %p290
        %p688 = pneg %p287
        %p689 = pneg %p311
        %p690 = pneg %p308
        %p691 = pneg %p332
        %p692 = pneg %p329
        %p693 = pneg %p353
        %p694 = pneg %p350
        %p695 = pneg %p374
        %p696 = pneg %p371
        %p697 = pneg %p395
        %p698 = pneg %p392
        %p699 = pneg %p416
        %p700 = pneg %p413
        %p701 = pneg %p444
        %p702 = pneg %p441
        %s703 = sand.u32 %s431, 1
        %s704 = scalar_lea.sflag [#allocation6], %s703
        %s705 = sand.u32 %s431, 1
        %s706 = smul.addr %s705, 8
        %s707 = scalar_lea.vmem [#allocation18], %s706
        %p709 = scmp.eq.s32.totalorder %s45, 0
        // Predicated region
        $region121: #{tpu_custom_call.1} parent=87 // pred_check
          %p710 = pneg %p709
        $region122: #{tpu_custom_call.1} parent=87 // pred_check_branch
          %712 = sbr.rel (%p710) target = $region124
        $region123: #{tpu_custom_call.1} parent=87 // pred_region
          %v713 = vld [vmem:[%s619] sm:$0xff]
          %v714 = vld [vmem:[%s619 + $0x8] sm:$0xff]
          %v715 = vpack.c.bf16 %v714, %v713
          %v716 = vld [vmem:[#allocation10] sm:$0xf]
          %v717 = vld [vmem:[#allocation10 + $0x4] sm:$0xf]
          %v718 = vld [vmem:[#allocation10 + $0x8] sm:$0xf]
          %v719 = vld [vmem:[#allocation10 + $0xc] sm:$0xf]
          %v720 = vld [vmem:[#allocation10 + $0x10] sm:$0xf]
          %v721 = vld [vmem:[#allocation10 + $0x14] sm:$0xf]
          %v722 = vld [vmem:[#allocation10 + $0x18] sm:$0xf]
          %v723 = vld [vmem:[#allocation10 + $0x1c] sm:$0xf]
          %v724 = vld [vmem:[#allocation10 + $0x20] sm:$0xf]
          %v725 = vld [vmem:[#allocation10 + $0x24] sm:$0xf]
          %v726 = vld [vmem:[#allocation10 + $0x28] sm:$0xf]
          %v727 = vld [vmem:[#allocation10 + $0x2c] sm:$0xf]
          %v728 = vld [vmem:[#allocation10 + $0x30] sm:$0xf]
          %v729 = vld [vmem:[#allocation10 + $0x34] sm:$0xf]
          %v730 = vld [vmem:[#allocation10 + $0x38] sm:$0xf]
          %v731 = vld [vmem:[#allocation10 + $0x3c] sm:$0xf]
          %v748 = vunpack.c.l.b16 %v716
          %v749 = vunpack.c.l.b16 %v717
          %v750 = vunpack.c.l.b16 %v718
          %v751 = vunpack.c.l.b16 %v719
          %v752 = vunpack.c.l.b16 %v720
          %v753 = vunpack.c.l.b16 %v721
          %v754 = vunpack.c.l.b16 %v722
          %v755 = vunpack.c.l.b16 %v723
          %v756 = vunpack.c.l.b16 %v724
          %v757 = vunpack.c.l.b16 %v725
          %v758 = vunpack.c.l.b16 %v726
          %v759 = vunpack.c.l.b16 %v727
          %v760 = vunpack.c.l.b16 %v728
          %v761 = vunpack.c.l.b16 %v729
          %v762 = vunpack.c.l.b16 %v730
          %v763 = vunpack.c.l.b16 %v731
          %v764 = vpack.c.b16 %v749, %v748
          %v765 = vpack.c.b16 %v751, %v750
          %v766 = vpack.c.b16 %v753, %v752
          %v767 = vpack.c.b16 %v755, %v754
          %v768 = vpack.c.b16 %v757, %v756
          %v769 = vpack.c.b16 %v759, %v758
          %v770 = vpack.c.b16 %v761, %v760
          %v771 = vpack.c.b16 %v763, %v762
          %780 = vmatprep.subr.bf16.mxu0 0
          %781 = vmatpush1.bf16.msra.mxu0 %v771
          %782 = vmatprep.subr.bf16.mxu0 0
          %783 = vmatpush1.bf16.msra.mxu0 %v770
          %784 = vmatprep.subr.bf16.mxu0 0
          %785 = vmatpush1.bf16.msra.mxu0 %v769
          %786 = vmatprep.subr.bf16.mxu0 0
          %787 = vmatpush1.bf16.msra.mxu0 %v768
          %788 = vmatprep.subr.bf16.mxu0 0
          %789 = vmatpush1.bf16.msra.mxu0 %v767
          %790 = vmatprep.subr.bf16.mxu0 0
          %791 = vmatpush1.bf16.msra.mxu0 %v766
          %792 = vmatprep.subr.bf16.mxu0 0
          %793 = vmatpush1.bf16.msra.mxu0 %v765
          %794 = vmatprep.subr.bf16.mxu0 0
          %795 = vmatpush1.bf16.msra.mxu0 %v764
          %796 = vmatprep.subr.bf16.mxu0 0
          %797 = vmatpush2.bf16.msra.mxu0 0
          %798 = vmatprep.subr.bf16.mxu0 0
          %799 = vmatpush2.bf16.msra.mxu0 0
          %800 = vmatprep.subr.bf16.mxu0 0
          %801 = vmatpush2.bf16.msra.mxu0 0
          %802 = vmatprep.subr.bf16.mxu0 0
          %803 = vmatpush2.bf16.msra.mxu0 0
          %804 = vmatprep.subr.bf16.mxu0 0
          %805 = vmatpush2.bf16.msra.mxu0 0
          %806 = vmatprep.subr.bf16.mxu0 0
          %807 = vmatpush2.bf16.msra.mxu0 0
          %808 = vmatprep.subr.bf16.mxu0 0
          %809 = vmatpush2.bf16.msra.mxu0 0
          %810 = vmatprep.subr.bf16.mxu0 0
          %811 = vmatpush2.bf16.msra.mxu0 0
          %812 = vmatprep.mubr.bf16.mxu0 0
          %813 = vmatmul.mubr.bf16.gmra.mxu0 %v715
          %v814 = vpop.f32.mrf.mxu0
          %v815 = vadd.f32 0.0, %v814
          %v816 = vpop.f32.mrf.mxu0
          %v817 = vpop.f32.mrf.mxu0
          %v818 = vadd.f32 0.0, %v817
          %v819 = vpop.f32.mrf.mxu0
          %820 = vdwg.mxu0
          %v821 = vld [vmem:[#allocation9] sm:$0xf]
          %v822 = vld [vmem:[#allocation9 + $0x4] sm:$0xf]
          %v823 = vld [vmem:[#allocation9 + $0x8] sm:$0xf]
          %v824 = vld [vmem:[#allocation9 + $0xc] sm:$0xf]
          %v825 = vld [vmem:[#allocation9 + $0x10] sm:$0xf]
          %v826 = vld [vmem:[#allocation9 + $0x14] sm:$0xf]
          %v827 = vld [vmem:[#allocation9 + $0x18] sm:$0xf]
          %v828 = vld [vmem:[#allocation9 + $0x1c] sm:$0xf]
          %v829 = vld [vmem:[#allocation9 + $0x20] sm:$0xf]
          %v830 = vld [vmem:[#allocation9 + $0x24] sm:$0xf]
          %v831 = vld [vmem:[#allocation9 + $0x28] sm:$0xf]
          %v832 = vld [vmem:[#allocation9 + $0x2c] sm:$0xf]
          %v833 = vld [vmem:[#allocation9 + $0x30] sm:$0xf]
          %v834 = vld [vmem:[#allocation9 + $0x34] sm:$0xf]
          %v835 = vld [vmem:[#allocation9 + $0x38] sm:$0xf]
          %v836 = vld [vmem:[#allocation9 + $0x3c] sm:$0xf]
          %v837 = vld [vmem:[%s3] sm:$0x1]
          %v839 = vlaneseq
          %v840 = vshrl.u32 %v839, 7
          %v841 = vsub.s32 0, %v840
          %v842 = vrot.slane %v837, %v841
          %v860 = vunpack.c.l.b16 %v821
          %v861 = vunpack.c.l.b16 %v822
          %v862 = vunpack.c.l.b16 %v823
          %v863 = vunpack.c.l.b16 %v824
          %v864 = vunpack.c.l.b16 %v825
          %v865 = vunpack.c.l.b16 %v826
          %v866 = vunpack.c.l.b16 %v827
          %v867 = vunpack.c.l.b16 %v828
          %v868 = vunpack.c.l.b16 %v829
          %v869 = vunpack.c.l.b16 %v830
          %v870 = vunpack.c.l.b16 %v831
          %v871 = vunpack.c.l.b16 %v832
          %v872 = vunpack.c.l.b16 %v833
          %v873 = vunpack.c.l.b16 %v834
          %v874 = vunpack.c.l.b16 %v835
          %v875 = vunpack.c.l.b16 %v836
          %v876 = vpack.c.b16 %v861, %v860
          %v877 = vpack.c.b16 %v863, %v862
          %v878 = vpack.c.b16 %v865, %v864
          %v879 = vpack.c.b16 %v867, %v866
          %v880 = vpack.c.b16 %v869, %v868
          %v881 = vpack.c.b16 %v871, %v870
          %v882 = vpack.c.b16 %v873, %v872
          %v883 = vpack.c.b16 %v875, %v874
          %892 = vmatprep.subr.bf16.mxu0 0
          %893 = vmatpush1.bf16.msra.mxu0 %v883
          %894 = vmatprep.subr.bf16.mxu0 0
          %895 = vmatpush1.bf16.msra.mxu0 %v882
          %896 = vmatprep.subr.bf16.mxu0 0
          %897 = vmatpush1.bf16.msra.mxu0 %v881
          %898 = vmatprep.subr.bf16.mxu0 0
          %899 = vmatpush1.bf16.msra.mxu0 %v880
          %900 = vmatprep.subr.bf16.mxu0 0
          %901 = vmatpush1.bf16.msra.mxu0 %v879
          %902 = vmatprep.subr.bf16.mxu0 0
          %903 = vmatpush1.bf16.msra.mxu0 %v878
          %904 = vmatprep.subr.bf16.mxu0 0
          %905 = vmatpush1.bf16.msra.mxu0 %v877
          %906 = vmatprep.subr.bf16.mxu0 0
          %907 = vmatpush1.bf16.msra.mxu0 %v876
          %908 = vmatprep.subr.bf16.mxu0 0
          %909 = vmatpush2.bf16.msra.mxu0 0
          %910 = vmatprep.subr.bf16.mxu0 0
          %911 = vmatpush2.bf16.msra.mxu0 0
          %912 = vmatprep.subr.bf16.mxu0 0
          %913 = vmatpush2.bf16.msra.mxu0 0
          %914 = vmatprep.subr.bf16.mxu0 0
          %915 = vmatpush2.bf16.msra.mxu0 0
          %916 = vmatprep.subr.bf16.mxu0 0
          %917 = vmatpush2.bf16.msra.mxu0 0
          %918 = vmatprep.subr.bf16.mxu0 0
          %919 = vmatpush2.bf16.msra.mxu0 0
          %920 = vmatprep.subr.bf16.mxu0 0
          %921 = vmatpush2.bf16.msra.mxu0 0
          %922 = vmatprep.subr.bf16.mxu0 0
          %923 = vmatpush2.bf16.msra.mxu0 0
          %924 = vmatprep.mubr.bf16.mxu0 0
          %925 = vmatmul.mubr.bf16.gmra.mxu0 %v715
          %v926 = vpop.f32.mrf.mxu0
          %v927 = vadd.f32 %v842, %v926
          %v928 = vpop.f32.mrf.mxu0
          %v929 = vpop.f32.mrf.mxu0
          %v930 = vadd.f32 %v842, %v929
          %v931 = vpop.f32.mrf.mxu0
          %932 = vdwg.mxu0
          %v933 = vpack.c.bf16 %v818, %v815
          %v935 = vunpack.c.l.b16 %v933
          %v936 = vunpack.c.h.b16 %v933
          %v937 = vpack.c.b16 %v935, %v935
          %v938 = vpack.c.b16 %v936, %v936
          %941 = vst [vmem:[#allocation2] sm:$0xf] %v937
          %942 = vst [vmem:[#allocation2 + $0x4] sm:$0xf] %v938
          %v943 = vpack.c.bf16 %v930, %v927
          %v945 = vunpack.c.l.b16 %v943
          %v946 = vunpack.c.h.b16 %v943
          %v947 = vpack.c.b16 %v945, %v945
          %v948 = vpack.c.b16 %v946, %v946
          %951 = vst [vmem:[#allocation3] sm:$0xf] %v947
          %952 = vst [vmem:[#allocation3 + $0x4] sm:$0xf] %v948
        $region124: #{tpu_custom_call.1} parent=87 // pred_fallthru
          _
        %v953 = vld [vmem:[#allocation2] sm:$0xf]
        %v954 = vld [vmem:[#allocation2 + $0x4] sm:$0xf]
        %v955 = vld [vmem:[#allocation3] sm:$0xf]
        %v956 = vld [vmem:[#allocation3 + $0x4] sm:$0xf]
        %v957 = vld [vmem:[%s628] sm:$0xff]
        %v958 = vpack.c.bf16 %v957, %v957
        %v959 = vld [vmem:[#allocation12] sm:$0xf]
        %v960 = vld [vmem:[#allocation12 + $0x4] sm:$0xf]
        %v961 = vld [vmem:[#allocation12 + $0x8] sm:$0xf]
        %v962 = vld [vmem:[#allocation12 + $0xc] sm:$0xf]
        %v963 = vld [vmem:[#allocation12 + $0x10] sm:$0xf]
        %v964 = vld [vmem:[#allocation12 + $0x14] sm:$0xf]
        %v965 = vld [vmem:[#allocation12 + $0x18] sm:$0xf]
        %v966 = vld [vmem:[#allocation12 + $0x1c] sm:$0xf]
        %v967 = vld [vmem:[#allocation12 + $0x20] sm:$0xf]
        %v968 = vld [vmem:[#allocation12 + $0x24] sm:$0xf]
        %v969 = vld [vmem:[#allocation12 + $0x28] sm:$0xf]
        %v970 = vld [vmem:[#allocation12 + $0x2c] sm:$0xf]
        %v971 = vld [vmem:[#allocation12 + $0x30] sm:$0xf]
        %v972 = vld [vmem:[#allocation12 + $0x34] sm:$0xf]
        %v973 = vld [vmem:[#allocation12 + $0x38] sm:$0xf]
        %v974 = vld [vmem:[#allocation12 + $0x3c] sm:$0xf]
        %v975 = vld [vmem:[%s6] sm:$0x1]
        %v977 = vlaneseq
        %v978 = vshrl.u32 %v977, 7
        %v979 = vsub.s32 0, %v978
        %v980 = vrot.slane %v975, %v979
        %v998 = vunpack.c.l.b16 %v959
        %v999 = vunpack.c.l.b16 %v960
        %v1000 = vunpack.c.l.b16 %v961
        %v1001 = vunpack.c.l.b16 %v962
        %v1002 = vunpack.c.l.b16 %v963
        %v1003 = vunpack.c.l.b16 %v964
        %v1004 = vunpack.c.l.b16 %v965
        %v1005 = vunpack.c.l.b16 %v966
        %v1006 = vunpack.c.l.b16 %v967
        %v1007 = vunpack.c.l.b16 %v968
        %v1008 = vunpack.c.l.b16 %v969
        %v1009 = vunpack.c.l.b16 %v970
        %v1010 = vunpack.c.l.b16 %v971
        %v1011 = vunpack.c.l.b16 %v972
        %v1012 = vunpack.c.l.b16 %v973
        %v1013 = vunpack.c.l.b16 %v974
        %v1014 = vpack.c.b16 %v999, %v998
        %v1015 = vpack.c.b16 %v1001, %v1000
        %v1016 = vpack.c.b16 %v1003, %v1002
        %v1017 = vpack.c.b16 %v1005, %v1004
        %v1018 = vpack.c.b16 %v1007, %v1006
        %v1019 = vpack.c.b16 %v1009, %v1008
        %v1020 = vpack.c.b16 %v1011, %v1010
        %v1021 = vpack.c.b16 %v1013, %v1012
        %1030 = vmatprep.subr.bf16.mxu0 0
        %1031 = vmatpush1.bf16.msra.mxu0 %v1021
        %1032 = vmatprep.subr.bf16.mxu0 0
        %1033 = vmatpush1.bf16.msra.mxu0 %v1020
        %1034 = vmatprep.subr.bf16.mxu0 0
        %1035 = vmatpush1.bf16.msra.mxu0 %v1019
        %1036 = vmatprep.subr.bf16.mxu0 0
        %1037 = vmatpush1.bf16.msra.mxu0 %v1018
        %1038 = vmatprep.subr.bf16.mxu0 0
        %1039 = vmatpush1.bf16.msra.mxu0 %v1017
        %1040 = vmatprep.subr.bf16.mxu0 0
        %1041 = vmatpush1.bf16.msra.mxu0 %v1016
        %1042 = vmatprep.subr.bf16.mxu0 0
        %1043 = vmatpush1.bf16.msra.mxu0 %v1015
        %1044 = vmatprep.subr.bf16.mxu0 0
        %1045 = vmatpush1.bf16.msra.mxu0 %v1014
        %1046 = vmatprep.subr.bf16.mxu0 0
        %1047 = vmatpush2.bf16.msra.mxu0 0
        %1048 = vmatprep.subr.bf16.mxu0 0
        %1049 = vmatpush2.bf16.msra.mxu0 0
        %1050 = vmatprep.subr.bf16.mxu0 0
        %1051 = vmatpush2.bf16.msra.mxu0 0
        %1052 = vmatprep.subr.bf16.mxu0 0
        %1053 = vmatpush2.bf16.msra.mxu0 0
        %1054 = vmatprep.subr.bf16.mxu0 0
        %1055 = vmatpush2.bf16.msra.mxu0 0
        %1056 = vmatprep.subr.bf16.mxu0 0
        %1057 = vmatpush2.bf16.msra.mxu0 0
        %1058 = vmatprep.subr.bf16.mxu0 0
        %1059 = vmatpush2.bf16.msra.mxu0 0
        %1060 = vmatprep.subr.bf16.mxu0 0
        %1061 = vmatpush2.bf16.msra.mxu0 0
        %1062 = vmatprep.mubr.bf16.mxu0 0
        %1063 = vmatmul.mubr.bf16.gmra.mxu0 %v958
        %v1064 = vpop.f32.mrf.mxu0
        %v1065 = vadd.f32 %v980, %v1064
        %v1066 = vpop.f32.mrf.mxu0
        %v1067 = vpop.f32.mrf.mxu0
        %v1068 = vpop.f32.mrf.mxu0
        %1069 = vdwg.mxu0
        %v1070 = vpack.c.bf16 %v1065, %v1065
        %v1073 = vunpack.c.l.b16 %v953
        %v1074 = vunpack.c.l.b16 %v954
        %v1075 = vpack.c.b16 %v1074, %v1073
        %1077 = vmatprep.subr.bf16.mxu0 0
        %1078 = vmatpush1.bf16.xpose.msra.mxu0 0
        %1079 = vmatprep.subr.bf16.mxu0 0
        %1080 = vmatpush1.bf16.xpose.msra.mxu0 0
        %1081 = vmatprep.subr.bf16.mxu0 0
        %1082 = vmatpush1.bf16.xpose.msra.mxu0 0
        %1083 = vmatprep.subr.bf16.mxu0 0
        %1084 = vmatpush1.bf16.xpose.msra.mxu0 0
        %1085 = vmatprep.subr.bf16.mxu0 0
        %1086 = vmatpush1.bf16.xpose.msra.mxu0 0
        %1087 = vmatprep.subr.bf16.mxu0 0
        %1088 = vmatpush1.bf16.xpose.msra.mxu0 0
        %1089 = vmatprep.subr.bf16.mxu0 0
        %1090 = vmatpush1.bf16.xpose.msra.mxu0 0
        %1091 = vmatprep.subr.bf16.mxu0 0
        %1092 = vmatpush1.bf16.xpose.msra.mxu0 %v1075
        %1093 = vmatprep.subr.bf16.mxu0 0
        %1094 = vmatpush2.bf16.xpose.msra.mxu0 0
        %1095 = vmatprep.subr.bf16.mxu0 0
        %1096 = vmatpush2.bf16.xpose.msra.mxu0 0
        %1097 = vmatprep.subr.bf16.mxu0 0
        %1098 = vmatpush2.bf16.xpose.msra.mxu0 0
        %1099 = vmatprep.subr.bf16.mxu0 0
        %1100 = vmatpush2.bf16.xpose.msra.mxu0 0
        %1101 = vmatprep.subr.bf16.mxu0 0
        %1102 = vmatpush2.bf16.xpose.msra.mxu0 0
        %1103 = vmatprep.subr.bf16.mxu0 0
        %1104 = vmatpush2.bf16.xpose.msra.mxu0 0
        %1105 = vmatprep.subr.bf16.mxu0 0
        %1106 = vmatpush2.bf16.xpose.msra.mxu0 0
        %1107 = vmatprep.subr.bf16.mxu0 0
        %1108 = vmatpush2.bf16.xpose.msra.mxu0 0
        %1109 = vmatprep.mubr.bf16.mxu0 0
        %1110 = vmatmul.mubr.bf16.gmra.mxu0 %v1070
        %v1111 = vpop.f32.mrf.mxu0
        %v1112 = vadd.f32 0.0, %v1111
        %v1113 = vpop.f32.mrf.mxu0
        %v1114 = vpop.f32.mrf.mxu0
        %v1115 = vpop.f32.mrf.mxu0
        %1116 = vdwg.mxu0
        %vm1117 = vcmask 130048
        %v1118 = vsel %vm1117, %v1112, -inf
        %1119 = vmax.xlane.f32.xlu0 %v1118
        %v1120 = vpop.xlane.xlu0 %1119
        %v1121 = vsub.f32 %v1112, %v1120
        %v1122 = vmul.f32 %v1121, 1.442695
        %v1123 = vpow.pop %v1122
        %v1124 = vsel %vm1117, %v1123, 0.0
        %1125 = vadd.xlane.f32.xlu0 %v1124
        %v1126 = vpop.xlane.xlu0 %1125
        %v1127 = vrcp.pop %v1126
        %v1128 = vmul.f32 %v1123, %v1127
        %v1129 = vpack.c.bf16 %v1128, %v1128
        %v1132 = vunpack.c.l.b16 %v955
        %v1133 = vunpack.c.l.b16 %v956
        %v1134 = vpack.c.b16 %v1133, %v1132
        %v1137 = vsel %vm1117, %v1129, 0
        %1139 = vmatprep.subr.bf16.mxu0 0
        %1140 = vmatpush1.bf16.msra.mxu0 0
        %1141 = vmatprep.subr.bf16.mxu0 0
        %1142 = vmatpush1.bf16.msra.mxu0 0
        %1143 = vmatprep.subr.bf16.mxu0 0
        %1144 = vmatpush1.bf16.msra.mxu0 0
        %1145 = vmatprep.subr.bf16.mxu0 0
        %1146 = vmatpush1.bf16.msra.mxu0 0
        %1147 = vmatprep.subr.bf16.mxu0 0
        %1148 = vmatpush1.bf16.msra.mxu0 0
        %1149 = vmatprep.subr.bf16.mxu0 0
        %1150 = vmatpush1.bf16.msra.mxu0 0
        %1151 = vmatprep.subr.bf16.mxu0 0
        %1152 = vmatpush1.bf16.msra.mxu0 0
        %1153 = vmatprep.subr.bf16.mxu0 0
        %1154 = vmatpush1.bf16.msra.mxu0 %v1134
        %1155 = vmatprep.subr.bf16.mxu0 0
        %1156 = vmatpush2.bf16.msra.mxu0 0
        %1157 = vmatprep.subr.bf16.mxu0 0
        %1158 = vmatpush2.bf16.msra.mxu0 0
        %1159 = vmatprep.subr.bf16.mxu0 0
        %1160 = vmatpush2.bf16.msra.mxu0 0
        %1161 = vmatprep.subr.bf16.mxu0 0
        %1162 = vmatpush2.bf16.msra.mxu0 0
        %1163 = vmatprep.subr.bf16.mxu0 0
        %1164 = vmatpush2.bf16.msra.mxu0 0
        %1165 = vmatprep.subr.bf16.mxu0 0
        %1166 = vmatpush2.bf16.msra.mxu0 0
        %1167 = vmatprep.subr.bf16.mxu0 0
        %1168 = vmatpush2.bf16.msra.mxu0 0
        %1169 = vmatprep.subr.bf16.mxu0 0
        %1170 = vmatpush2.bf16.msra.mxu0 0
        %1171 = vmatprep.mubr.bf16.mxu0 0
        %1172 = vmatmul.mubr.bf16.gmra.mxu0 %v1137
        %v1173 = vpop.f32.mrf.mxu0
        %v1174 = vadd.f32 0.0, %v1173
        %v1175 = vpop.f32.mrf.mxu0
        %v1176 = vpop.f32.mrf.mxu0
        %v1177 = vpop.f32.mrf.mxu0
        %1178 = vdwg.mxu0
        %v1179 = vpack.c.bf16 %v1174, %v1174
        %v1180 = vld [vmem:[#allocation13] sm:$0xf]
        %v1181 = vld [vmem:[#allocation13 + $0x4] sm:$0xf]
        %v1182 = vld [vmem:[#allocation13 + $0x8] sm:$0xf]
        %v1183 = vld [vmem:[#allocation13 + $0xc] sm:$0xf]
        %v1184 = vld [vmem:[#allocation13 + $0x10] sm:$0xf]
        %v1185 = vld [vmem:[#allocation13 + $0x14] sm:$0xf]
        %v1186 = vld [vmem:[#allocation13 + $0x18] sm:$0xf]
        %v1187 = vld [vmem:[#allocation13 + $0x1c] sm:$0xf]
        %v1188 = vld [vmem:[#allocation13 + $0x20] sm:$0xf]
        %v1189 = vld [vmem:[#allocation13 + $0x24] sm:$0xf]
        %v1190 = vld [vmem:[#allocation13 + $0x28] sm:$0xf]
        %v1191 = vld [vmem:[#allocation13 + $0x2c] sm:$0xf]
        %v1192 = vld [vmem:[#allocation13 + $0x30] sm:$0xf]
        %v1193 = vld [vmem:[#allocation13 + $0x34] sm:$0xf]
        %v1194 = vld [vmem:[#allocation13 + $0x38] sm:$0xf]
        %v1195 = vld [vmem:[#allocation13 + $0x3c] sm:$0xf]
        %v1196 = vld [vmem:[%s8] sm:$0x1]
        %v1198 = vlaneseq
        %v1199 = vshrl.u32 %v1198, 7
        %v1200 = vsub.s32 0, %v1199
        %v1201 = vrot.slane %v1196, %v1200
        %v1219 = vunpack.c.l.b16 %v1180
        %v1220 = vunpack.c.l.b16 %v1181
        %v1221 = vunpack.c.l.b16 %v1182
        %v1222 = vunpack.c.l.b16 %v1183
        %v1223 = vunpack.c.l.b16 %v1184
        %v1224 = vunpack.c.l.b16 %v1185
        %v1225 = vunpack.c.l.b16 %v1186
        %v1226 = vunpack.c.l.b16 %v1187
        %v1227 = vunpack.c.l.b16 %v1188
        %v1228 = vunpack.c.l.b16 %v1189
        %v1229 = vunpack.c.l.b16 %v1190
        %v1230 = vunpack.c.l.b16 %v1191
        %v1231 = vunpack.c.l.b16 %v1192
        %v1232 = vunpack.c.l.b16 %v1193
        %v1233 = vunpack.c.l.b16 %v1194
        %v1234 = vunpack.c.l.b16 %v1195
        %v1235 = vpack.c.b16 %v1220, %v1219
        %v1236 = vpack.c.b16 %v1222, %v1221
        %v1237 = vpack.c.b16 %v1224, %v1223
        %v1238 = vpack.c.b16 %v1226, %v1225
        %v1239 = vpack.c.b16 %v1228, %v1227
        %v1240 = vpack.c.b16 %v1230, %v1229
        %v1241 = vpack.c.b16 %v1232, %v1231
        %v1242 = vpack.c.b16 %v1234, %v1233
        %1251 = vmatprep.subr.bf16.mxu0 0
        %1252 = vmatpush1.bf16.msra.mxu0 %v1242
        %1253 = vmatprep.subr.bf16.mxu0 0
        %1254 = vmatpush1.bf16.msra.mxu0 %v1241
        %1255 = vmatprep.subr.bf16.mxu0 0
        %1256 = vmatpush1.bf16.msra.mxu0 %v1240
        %1257 = vmatprep.subr.bf16.mxu0 0
        %1258 = vmatpush1.bf16.msra.mxu0 %v1239
        %1259 = vmatprep.subr.bf16.mxu0 0
        %1260 = vmatpush1.bf16.msra.mxu0 %v1238
        %1261 = vmatprep.subr.bf16.mxu0 0
        %1262 = vmatpush1.bf16.msra.mxu0 %v1237
        %1263 = vmatprep.subr.bf16.mxu0 0
        %1264 = vmatpush1.bf16.msra.mxu0 %v1236
        %1265 = vmatprep.subr.bf16.mxu0 0
        %1266 = vmatpush1.bf16.msra.mxu0 %v1235
        %1267 = vmatprep.subr.bf16.mxu0 0
        %1268 = vmatpush2.bf16.msra.mxu0 0
        %1269 = vmatprep.subr.bf16.mxu0 0
        %1270 = vmatpush2.bf16.msra.mxu0 0
        %1271 = vmatprep.subr.bf16.mxu0 0
        %1272 = vmatpush2.bf16.msra.mxu0 0
        %1273 = vmatprep.subr.bf16.mxu0 0
        %1274 = vmatpush2.bf16.msra.mxu0 0
        %1275 = vmatprep.subr.bf16.mxu0 0
        %1276 = vmatpush2.bf16.msra.mxu0 0
        %1277 = vmatprep.subr.bf16.mxu0 0
        %1278 = vmatpush2.bf16.msra.mxu0 0
        %1279 = vmatprep.subr.bf16.mxu0 0
        %1280 = vmatpush2.bf16.msra.mxu0 0
        %1281 = vmatprep.subr.bf16.mxu0 0
        %1282 = vmatpush2.bf16.msra.mxu0 0
        %1283 = vmatprep.mubr.bf16.mxu0 0
        %1284 = vmatmul.mubr.bf16.gmra.mxu0 %v1179
        %v1285 = vpop.f32.mrf.mxu0
        %v1286 = vadd.f32 %v1201, %v1285
        %v1287 = vpop.f32.mrf.mxu0
        %v1288 = vpop.f32.mrf.mxu0
        %v1289 = vpop.f32.mrf.mxu0
        %1290 = vdwg.mxu0
        %v1291 = vadd.f32 %v957, %v1286
        %v1292 = vld [vmem:[%s9] sm:$0x1]
        %v1293 = vld [vmem:[%s10] sm:$0x1]
        %1294 = vadd.xlane.f32.xlu0 %v1291
        %v1295 = vpop.xlane.xlu0 %1294
        %v1296 = vrcp.pop 128.0
        %v1297 = vmul.f32 %v1295, %v1296
        %v1298 = vsub.f32 %v1291, %v1297
        %v1299 = vmul.f32 %v1298, %v1298
        %1300 = vadd.xlane.f32.xlu0 %v1299
        %v1301 = vpop.xlane.xlu0 %1300
        %v1302 = vmul.f32 %v1301, 0.007874016
        %v1303 = vrsqrt.pop %v1302
        %v1304 = vmul.f32 %v1302, %v1303
        %vm1305 = vcmp.eq.f32.partialorder %v1302, inf
        %v1306 = vsel %vm1305, %v1302, %v1304
        %vm1307 = vcmp.eq.f32.partialorder %v1302, 0.0
        %v1308 = vand.u32 %v1302, 2147483648
        %v1309 = vsel %vm1307, %v1308, %v1306
        %v1310 = vadd.f32 %v1309, 1e-06
        %v1311 = vrcp.pop %v1310
        %v1312 = vmul.f32 1.0, %v1311
        %v1313 = vmul.f32 %v1298, %v1312
        %v1315 = vlaneseq
        %v1316 = vshrl.u32 %v1315, 7
        %v1317 = vsub.s32 0, %v1316
        %v1318 = vrot.slane %v1292, %v1317
        %v1320 = vmul.f32 %v1313, %v1318
        %v1322 = vlaneseq
        %v1323 = vshrl.u32 %v1322, 7
        %v1324 = vsub.s32 0, %v1323
        %v1325 = vrot.slane %v1293, %v1324
        %v1327 = vadd.f32 %v1320, %v1325
        %v1328 = vpack.c.bf16 %v1327, %v1327
        %v1329 = vld [vmem:[#allocation15] sm:$0xf]
        %v1330 = vld [vmem:[#allocation15 + $0x4] sm:$0xf]
        %v1331 = vld [vmem:[#allocation15 + $0x8] sm:$0xf]
        %v1332 = vld [vmem:[#allocation15 + $0xc] sm:$0xf]
        %v1333 = vld [vmem:[#allocation15 + $0x10] sm:$0xf]
        %v1334 = vld [vmem:[#allocation15 + $0x14] sm:$0xf]
        %v1335 = vld [vmem:[#allocation15 + $0x18] sm:$0xf]
        %v1336 = vld [vmem:[#allocation15 + $0x1c] sm:$0xf]
        %v1337 = vld [vmem:[#allocation15 + $0x20] sm:$0xf]
        %v1338 = vld [vmem:[#allocation15 + $0x24] sm:$0xf]
        %v1339 = vld [vmem:[#allocation15 + $0x28] sm:$0xf]
        %v1340 = vld [vmem:[#allocation15 + $0x2c] sm:$0xf]
        %v1341 = vld [vmem:[#allocation15 + $0x30] sm:$0xf]
        %v1342 = vld [vmem:[#allocation15 + $0x34] sm:$0xf]
        %v1343 = vld [vmem:[#allocation15 + $0x38] sm:$0xf]
        %v1344 = vld [vmem:[#allocation15 + $0x3c] sm:$0xf]
        %v1345 = vld [vmem:[%s12] sm:$0x1]
        %v1347 = vlaneseq
        %v1348 = vshrl.u32 %v1347, 7
        %v1349 = vsub.s32 0, %v1348
        %v1350 = vrot.slane %v1345, %v1349
        %v1368 = vunpack.c.l.b16 %v1329
        %v1369 = vunpack.c.l.b16 %v1330
        %v1370 = vunpack.c.l.b16 %v1331
        %v1371 = vunpack.c.l.b16 %v1332
        %v1372 = vunpack.c.l.b16 %v1333
        %v1373 = vunpack.c.l.b16 %v1334
        %v1374 = vunpack.c.l.b16 %v1335
        %v1375 = vunpack.c.l.b16 %v1336
        %v1376 = vunpack.c.l.b16 %v1337
        %v1377 = vunpack.c.l.b16 %v1338
        %v1378 = vunpack.c.l.b16 %v1339
        %v1379 = vunpack.c.l.b16 %v1340
        %v1380 = vunpack.c.l.b16 %v1341
        %v1381 = vunpack.c.l.b16 %v1342
        %v1382 = vunpack.c.l.b16 %v1343
        %v1383 = vunpack.c.l.b16 %v1344
        %v1384 = vpack.c.b16 %v1369, %v1368
        %v1385 = vpack.c.b16 %v1371, %v1370
        %v1386 = vpack.c.b16 %v1373, %v1372
        %v1387 = vpack.c.b16 %v1375, %v1374
        %v1388 = vpack.c.b16 %v1377, %v1376
        %v1389 = vpack.c.b16 %v1379, %v1378
        %v1390 = vpack.c.b16 %v1381, %v1380
        %v1391 = vpack.c.b16 %v1383, %v1382
        %1400 = vmatprep.subr.bf16.mxu0 0
        %1401 = vmatpush1.bf16.msra.mxu0 %v1391
        %1402 = vmatprep.subr.bf16.mxu0 0
        %1403 = vmatpush1.bf16.msra.mxu0 %v1390
        %1404 = vmatprep.subr.bf16.mxu0 0
        %1405 = vmatpush1.bf16.msra.mxu0 %v1389
        %1406 = vmatprep.subr.bf16.mxu0 0
        %1407 = vmatpush1.bf16.msra.mxu0 %v1388
        %1408 = vmatprep.subr.bf16.mxu0 0
        %1409 = vmatpush1.bf16.msra.mxu0 %v1387
        %1410 = vmatprep.subr.bf16.mxu0 0
        %1411 = vmatpush1.bf16.msra.mxu0 %v1386
        %1412 = vmatprep.subr.bf16.mxu0 0
        %1413 = vmatpush1.bf16.msra.mxu0 %v1385
        %1414 = vmatprep.subr.bf16.mxu0 0
        %1415 = vmatpush1.bf16.msra.mxu0 %v1384
        %1416 = vmatprep.subr.bf16.mxu0 0
        %1417 = vmatpush2.bf16.msra.mxu0 0
        %1418 = vmatprep.subr.bf16.mxu0 0
        %1419 = vmatpush2.bf16.msra.mxu0 0
        %1420 = vmatprep.subr.bf16.mxu0 0
        %1421 = vmatpush2.bf16.msra.mxu0 0
        %1422 = vmatprep.subr.bf16.mxu0 0
        %1423 = vmatpush2.bf16.msra.mxu0 0
        %1424 = vmatprep.subr.bf16.mxu0 0
        %1425 = vmatpush2.bf16.msra.mxu0 0
        %1426 = vmatprep.subr.bf16.mxu0 0
        %1427 = vmatpush2.bf16.msra.mxu0 0
        %1428 = vmatprep.subr.bf16.mxu0 0
        %1429 = vmatpush2.bf16.msra.mxu0 0
        %1430 = vmatprep.subr.bf16.mxu0 0
        %1431 = vmatpush2.bf16.msra.mxu0 0
        %1432 = vmatprep.mubr.bf16.mxu0 0
        %1433 = vmatmul.mubr.bf16.gmra.mxu0 %v1328
        %v1434 = vpop.f32.mrf.mxu0
        %v1435 = vadd.f32 %v1350, %v1434
        %v1436 = vpop.f32.mrf.mxu0
        %v1437 = vpop.f32.mrf.mxu0
        %v1438 = vpop.f32.mrf.mxu0
        %1439 = vdwg.mxu0
        %v1440 = vmax.f32 %v1435, 0.0
        %v1441 = vpack.c.bf16 %v1440, %v1440
        %v1442 = vld [vmem:[#allocation16] sm:$0xf]
        %v1443 = vld [vmem:[#allocation16 + $0x4] sm:$0xf]
        %v1444 = vld [vmem:[#allocation16 + $0x8] sm:$0xf]
        %v1445 = vld [vmem:[#allocation16 + $0xc] sm:$0xf]
        %v1446 = vld [vmem:[#allocation16 + $0x10] sm:$0xf]
        %v1447 = vld [vmem:[#allocation16 + $0x14] sm:$0xf]
        %v1448 = vld [vmem:[#allocation16 + $0x18] sm:$0xf]
        %v1449 = vld [vmem:[#allocation16 + $0x1c] sm:$0xf]
        %v1450 = vld [vmem:[#allocation16 + $0x20] sm:$0xf]
        %v1451 = vld [vmem:[#allocation16 + $0x24] sm:$0xf]
        %v1452 = vld [vmem:[#allocation16 + $0x28] sm:$0xf]
        %v1453 = vld [vmem:[#allocation16 + $0x2c] sm:$0xf]
        %v1454 = vld [vmem:[#allocation16 + $0x30] sm:$0xf]
        %v1455 = vld [vmem:[#allocation16 + $0x34] sm:$0xf]
        %v1456 = vld [vmem:[#allocation16 + $0x38] sm:$0xf]
        %v1457 = vld [vmem:[#allocation16 + $0x3c] sm:$0xf]
        %v1458 = vld [vmem:[%s14] sm:$0x1]
        %v1460 = vlaneseq
        %v1461 = vshrl.u32 %v1460, 7
        %v1462 = vsub.s32 0, %v1461
        %v1463 = vrot.slane %v1458, %v1462
        %v1481 = vunpack.c.l.b16 %v1442
        %v1482 = vunpack.c.l.b16 %v1443
        %v1483 = vunpack.c.l.b16 %v1444
        %v1484 = vunpack.c.l.b16 %v1445
        %v1485 = vunpack.c.l.b16 %v1446
        %v1486 = vunpack.c.l.b16 %v1447
        %v1487 = vunpack.c.l.b16 %v1448
        %v1488 = vunpack.c.l.b16 %v1449
        %v1489 = vunpack.c.l.b16 %v1450
        %v1490 = vunpack.c.l.b16 %v1451
        %v1491 = vunpack.c.l.b16 %v1452
        %v1492 = vunpack.c.l.b16 %v1453
        %v1493 = vunpack.c.l.b16 %v1454
        %v1494 = vunpack.c.l.b16 %v1455
        %v1495 = vunpack.c.l.b16 %v1456
        %v1496 = vunpack.c.l.b16 %v1457
        %v1497 = vpack.c.b16 %v1482, %v1481
        %v1498 = vpack.c.b16 %v1484, %v1483
        %v1499 = vpack.c.b16 %v1486, %v1485
        %v1500 = vpack.c.b16 %v1488, %v1487
        %v1501 = vpack.c.b16 %v1490, %v1489
        %v1502 = vpack.c.b16 %v1492, %v1491
        %v1503 = vpack.c.b16 %v1494, %v1493
        %v1504 = vpack.c.b16 %v1496, %v1495
        %1513 = vmatprep.subr.bf16.mxu0 0
        %1514 = vmatpush1.bf16.msra.mxu0 %v1504
        %1515 = vmatprep.subr.bf16.mxu0 0
        %1516 = vmatpush1.bf16.msra.mxu0 %v1503
        %1517 = vmatprep.subr.bf16.mxu0 0
        %1518 = vmatpush1.bf16.msra.mxu0 %v1502
        %1519 = vmatprep.subr.bf16.mxu0 0
        %1520 = vmatpush1.bf16.msra.mxu0 %v1501
        %1521 = vmatprep.subr.bf16.mxu0 0
        %1522 = vmatpush1.bf16.msra.mxu0 %v1500
        %1523 = vmatprep.subr.bf16.mxu0 0
        %1524 = vmatpush1.bf16.msra.mxu0 %v1499
        %1525 = vmatprep.subr.bf16.mxu0 0
        %1526 = vmatpush1.bf16.msra.mxu0 %v1498
        %1527 = vmatprep.subr.bf16.mxu0 0
        %1528 = vmatpush1.bf16.msra.mxu0 %v1497
        %1529 = vmatprep.subr.bf16.mxu0 0
        %1530 = vmatpush2.bf16.msra.mxu0 0
        %1531 = vmatprep.subr.bf16.mxu0 0
        %1532 = vmatpush2.bf16.msra.mxu0 0
        %1533 = vmatprep.subr.bf16.mxu0 0
        %1534 = vmatpush2.bf16.msra.mxu0 0
        %1535 = vmatprep.subr.bf16.mxu0 0
        %1536 = vmatpush2.bf16.msra.mxu0 0
        %1537 = vmatprep.subr.bf16.mxu0 0
        %1538 = vmatpush2.bf16.msra.mxu0 0
        %1539 = vmatprep.subr.bf16.mxu0 0
        %1540 = vmatpush2.bf16.msra.mxu0 0
        %1541 = vmatprep.subr.bf16.mxu0 0
        %1542 = vmatpush2.bf16.msra.mxu0 0
        %1543 = vmatprep.subr.bf16.mxu0 0
        %1544 = vmatpush2.bf16.msra.mxu0 0
        %1545 = vmatprep.mubr.bf16.mxu0 0
        %1546 = vmatmul.mubr.bf16.gmra.mxu0 %v1441
        %v1547 = vpop.f32.mrf.mxu0
        %v1548 = vadd.f32 %v1463, %v1547
        %v1549 = vpop.f32.mrf.mxu0
        %v1550 = vpop.f32.mrf.mxu0
        %v1551 = vpop.f32.mrf.mxu0
        %1552 = vdwg.mxu0
        %v1553 = vadd.f32 %v1327, %v1548
        %v1554 = vld [vmem:[%s15] sm:$0x1]
        %v1555 = vld [vmem:[%s16] sm:$0x1]
        %1556 = vadd.xlane.f32.xlu0 %v1553
        %v1557 = vpop.xlane.xlu0 %1556
        %v1558 = vmul.f32 %v1557, %v1296
        %v1559 = vsub.f32 %v1553, %v1558
        %v1560 = vmul.f32 %v1559, %v1559
        %1561 = vadd.xlane.f32.xlu0 %v1560
        %v1562 = vpop.xlane.xlu0 %1561
        %v1563 = vmul.f32 %v1562, 0.007874016
        %v1564 = vrsqrt.pop %v1563
        %v1565 = vmul.f32 %v1563, %v1564
        %vm1566 = vcmp.eq.f32.partialorder %v1563, inf
        %v1567 = vsel %vm1566, %v1563, %v1565
        %vm1568 = vcmp.eq.f32.partialorder %v1563, 0.0
        %v1569 = vand.u32 %v1563, 2147483648
        %v1570 = vsel %vm1568, %v1569, %v1567
        %v1571 = vadd.f32 %v1570, 1e-06
        %v1572 = vrcp.pop %v1571
        %v1573 = vmul.f32 1.0, %v1572
        %v1574 = vmul.f32 %v1559, %v1573
        %v1576 = vlaneseq
        %v1577 = vshrl.u32 %v1576, 7
        %v1578 = vsub.s32 0, %v1577
        %v1579 = vrot.slane %v1554, %v1578
        %v1581 = vmul.f32 %v1574, %v1579
        %v1583 = vlaneseq
        %v1584 = vshrl.u32 %v1583, 7
        %v1585 = vsub.s32 0, %v1584
        %v1586 = vrot.slane %v1555, %v1585
        %v1588 = vadd.f32 %v1581, %v1586
        %1589 = vst [vmem:[%s707] sm:$0xff] %v1588
        %s1590 = sand.u32 %s431, 1
        %s1591 = scalar_lea.sflag [#allocation6], %s1590
        %s1592 = sand.u32 %s431, 1
        %s1593 = smul.addr %s1592, 8
        %s1594 = scalar_lea.vmem [#allocation18], %s1593
        // Predicated region
        $region125: #{tpu_custom_call.1} parent=87 // pred_check
          %p1595 = pneg %p441
        $region126: #{tpu_custom_call.1} parent=87 // pred_check_branch
          %1597 = sbr.rel (%p1595) target = $region128
        $region127: #{tpu_custom_call.1} parent=87 // pred_region
          %s1599 = ssub.s32 128, 128
          %1600 = vsyncadd %s1591, %s1599
          %s1601 = sadd.s32 %s45, %s44
          %s1602 = smul.addr %s1601, 128
          %s1603 = scalar_lea.hbm %s17, %s1602
          %s1605 = sshll.u32 %s1594, 4
          %s1606 = int_to_ptr.vmem [resolvable:$true] %s1605
          %1608 = dma.vmem_to_hbm [thread:$0]  %s1606, 128, %s1603, %s1591
        $region128: #{tpu_custom_call.1} parent=87 // pred_fallthru
          _
      $region88: #{tpu_custom_call.1} parent=5 // pred_fallthru
        _
      %p1609 = scmp.le.s32.totalorder 2, %s35
      // Predicated region
      $region129: #{tpu_custom_call.1} parent=5 // pred_check
        %p1610 = pneg %p1609
      $region130: #{tpu_custom_call.1} parent=5 // pred_check_branch
        %1612 = sbr.rel (%p1610) target = $region132
      $region131: #{tpu_custom_call.1} parent=5 // pred_region
        %s1613 = ssub.s32 %s35, 2
        // Predicated region
        $region133: #{tpu_custom_call.1} parent=131 // pred_check
          %p1614 = pneg %p447
        $region134: #{tpu_custom_call.1} parent=131 // pred_check_branch
          %1616 = sbr.rel (%p1614) target = $region136
        $region135: #{tpu_custom_call.1} parent=131 // pred_region
          %s1617 = sand.u32 %s432, 1
          %s1618 = scalar_lea.sflag [#allocation6], %s1617
          %s1619 = sand.u32 %s432, 1
          %s1620 = smul.addr %s1619, 8
          %s1621 = scalar_lea.vmem [#allocation18], %s1620
          %1622 = dma.done %s1618, 128
        $region136: #{tpu_custom_call.1} parent=131 // pred_fallthru
          _
      $region132: #{tpu_custom_call.1} parent=5 // pred_fallthru
        _
    $region6: #{tpu_custom_call.1} parent=1 // loop_footer
      %s39 = sadd.s32 1, %s35
    $region7: #{tpu_custom_call.1} parent=1 // loop_footer_branch
      %34 = sbr.rel target = $region3
    $region8: #{tpu_custom_call.1} parent=1 // loop_exit
      _
    %1623 = vsyncpa [#allocation5], 1
    %s1624 = scalar_lea.sflag [#allocation5], 1
    %1625 = vsyncpa %s1624, 1
    %1626 = vsyncpa [#allocation8], 1
    %s1627 = scalar_lea.sflag [#allocation8], 1
    %1628 = vsyncpa %s1627, 1
    %1629 = vsyncpa [#allocation11], 1
    %1630 = vsyncpa [#allocation14], 1
    %1631 = vsyncpa [#allocation17], 1
    %1632 = vsyncpa [#allocation6], 1
    %s1633 = scalar_lea.sflag [#allocation6], 1
    %1634 = vsyncpa %s1633, 1

</llo_original>
